<compile_context>
chip_gen: v5e
topology: v5e:2x2
jax: 0.10.0
libtpu: 0.0.40
codegen_flags: <defaults>
</compile_context>

<pallas_src>
import functools
import numpy as np
import jax
import jax.numpy as jnp
from jax.experimental import pallas as pl
from jax.experimental.pallas import tpu as pltpu


def conv_out_size(input_size, kernel_size, stride, padding=0):
    return (input_size - kernel_size + 2 * padding) // stride + 1


def _build_tap_selectors(h_in, w_in, k, s):
    """S[t, p_in, p_out] = 1 iff input pixel p_in feeds kernel tap t of output pixel p_out."""
    h_out = conv_out_size(h_in, k, s)
    w_out = conv_out_size(w_in, k, s)
    sel = np.zeros((k * k, h_in * w_in, h_out * w_out), np.float32)
    for i in range(k):
        for j in range(k):
            t = i * k + j
            for ho in range(h_out):
                for wo in range(w_out):
                    sel[t, (s * ho + i) * w_in + (s * wo + j), ho * w_out + wo] = 1.0
    return sel, h_out, w_out


# ---------------------------------------------------------------------------
# Fused encoder kernel: conv layers (+ReLU) -> spatial softmax -> keypoints
# ---------------------------------------------------------------------------

def _encoder_kernel(n_layers, obs_ref, *refs):
    layer_refs = refs[:3 * n_layers]           # (w_taps, bias, selector) per layer
    pos_ref = refs[3 * n_layers]               # (2, HW_last)
    o_ref = refs[3 * n_layers + 1]             # (1, C_last, 2)

    x = obs_ref[0]                             # (Cin, H*W), channels-first, HW on lanes
    for li in range(n_layers):
        w_ref, b_ref, s_ref = layer_refs[3 * li:3 * li + 3]
        kk = w_ref.shape[0]                    # k*k taps
        cout = w_ref.shape[1]
        hw_out = s_ref.shape[2]
        acc = jnp.zeros((cout, hw_out), jnp.float32)
        for t in range(kk):                    # unrolled tap loop (9 taps for 3x3)
            xt = jnp.dot(x, s_ref[t], preferred_element_type=jnp.float32)        # tap gather
            acc = acc + jnp.dot(w_ref[t], xt, preferred_element_type=jnp.float32)  # conv tap
        acc = acc + b_ref[...]                 # (cout, 1) broadcast over lanes
        if li < n_layers - 1:
            acc = jnp.maximum(acc, 0.0)        # ReLU on all but the last conv
        x = acc                                # (cout, Hout*Wout)

    # SpatialSoftmax over the spatial (lane) axis; torch semantics, temperature = 1.0
    m = jnp.max(x, axis=-1, keepdims=True)
    e = jnp.exp(x - m)
    denom = jnp.sum(e, axis=-1, keepdims=True)
    p = e * pl.reciprocal(denom, approx=True)
    ex = jnp.sum(pos_ref[0:1, :] * p, axis=-1, keepdims=True)   # (C_last, 1)
    ey = jnp.sum(pos_ref[1:2, :] * p, axis=-1, keepdims=True)   # (C_last, 1)
    o_ref[0] = jnp.concatenate([ex, ey], axis=-1)               # (C_last, 2) keypoints


# ---------------------------------------------------------------------------
# Wrapper
# ---------------------------------------------------------------------------

def make_encoder_forward(conv_params, in_height, in_width):
    n_layers = len(conv_params)
    selectors = []
    h, w = in_height, in_width
    for (_, _, k, s) in conv_params:
        sel, h, w = _build_tap_selectors(h, w, k, s)
        selectors.append(jnp.asarray(sel))     # constant 0/1 tap-selection tensors
    c_last = conv_params[-1][1]

    kernel = functools.partial(_encoder_kernel, n_layers)

    @jax.jit
    def forward(obs_nchw, state, params):
        n, cin, hh, ww = obs_nchw.shape
        # Channels-first with HW flattened onto the lane axis (free reshape).
        x = obs_nchw.astype(jnp.float32).reshape(n, cin, hh * ww)

        inputs = [x]
        in_specs = [pl.BlockSpec((1, cin, hh * ww), lambda b: (b, 0, 0))]
        for li, (ci, co, k, s) in enumerate(conv_params):
            w_t = params[f'w{li}']             # torch layout (cout, cin, k, k)
            if li == 0:
                w_t = w_t / 255.0              # fold obs/255.0 into the first conv
            w_taps = jnp.transpose(w_t, (2, 3, 0, 1)).reshape(k * k, co, ci)
            b_col = params[f'b{li}'].reshape(co, 1)
            sel = selectors[li]
            inputs += [w_taps, b_col, sel]
            in_specs += [
                pl.BlockSpec(w_taps.shape, lambda b: (0, 0, 0)),
                pl.BlockSpec(b_col.shape, lambda b: (0, 0)),
                pl.BlockSpec(sel.shape, lambda b: (0, 0, 0)),
            ]
        inputs.append(params['pos'])
        in_specs.append(pl.BlockSpec(params['pos'].shape, lambda b: (0, 0)))

        kp = pl.pallas_call(
            kernel,
            out_shape=jax.ShapeDtypeStruct((n, c_last, 2), jnp.float32),
            grid=(n,),
            in_specs=in_specs,
            out_specs=pl.BlockSpec((1, c_last, 2), lambda b: (b, 0, 0)),
            compiler_params=pltpu.CompilerParams(
                dimension_semantics=("parallel",)),   # 2x on v7x (2 TCs), harmless on v5e/v6e
        )(*inputs)

        # (N, C, 2) -> (N, 2C) matches torch expected_xy.view(-1, channel*2) interleaving;
        # 'multi' encoder concatenation with state (trivially small, left to XLA).
        h_kp = kp.reshape(n, c_last * 2)
        return jnp.concatenate([h_kp, state], axis=-1)

    return forward


def make_params(key, conv_params, ss_height, ss_width):
    """Deterministic stand-in for the module's orthogonal-center-tap weight init."""
    params = {}
    keys = jax.random.split(key, 2 * len(conv_params))
    for li, (cin, cout, k, s) in enumerate(conv_params):
        params[f'w{li}'] = jax.random.normal(keys[2 * li], (cout, cin, k, k), jnp.float32) * 0.1
        params[f'b{li}'] = jax.random.normal(keys[2 * li + 1], (cout,), jnp.float32) * 0.01
    # Exact SpatialSoftmax.__init__ pos-grid construction (spatial dims are square in this
    # config, so the module's (channel, width, height) ordering ambiguity is moot).
    pos_x, pos_y = np.meshgrid(np.linspace(-1.0, 1.0, ss_height),
                               np.linspace(-1.0, 1.0, ss_width))
    pos_x = pos_x.reshape(ss_height * ss_width).astype(np.float32)
    pos_y = pos_y.reshape(ss_height * ss_width).astype(np.float32)
    params['pos'] = jnp.stack([jnp.asarray(pos_x), jnp.asarray(pos_y)], axis=0)  # (2, HW)
    return params


if __name__ == "__main__":
    obs_shape = (4, 16, 16)          # (channel, width, height), square spatial
    state_shape = (5,)
    batch = 2
    net_params = {'conv': [[-1, 8, 3, 2], [8, 16, 3, 2]], 'latent': 32}
    conv_params = [list(p) for p in net_params['conv']]
    conv_params[0][0] = obs_shape[0]                          # set input channels

    # track spatial dims exactly like init_conv does
    channel, width, height = obs_shape
    for (_, _, k, s) in conv_params:
        width = conv_out_size(width, k, s)
        height = conv_out_size(height, k, s)

    key = jax.random.PRNGKey(0)
    k_obs, k_state, k_params = jax.random.split(key, 3)
    obs = jax.random.uniform(k_obs, (batch,) + obs_shape, jnp.float32, 0.0, 255.0)
    state = jax.random.normal(k_state, (batch, state_shape[0]), jnp.float32)
    params = make_params(k_params, conv_params, height, width)

    forward = make_encoder_forward(conv_params, obs_shape[1], obs_shape[2])
    out = forward(obs, state, params)
    out = jax.block_until_ready(out)

    expected_latent = conv_params[-1][1] * 2 + state_shape[0]
    assert out.shape == (batch, expected_latent), out.shape
    assert out.dtype == jnp.float32
    print("KERNEL_OK")
</pallas_src>

<mosaic_0001>
module attributes {stable_mosaic.version = 11 : i64} {
  func.func @_encoder_kernel(%arg0: i32, %arg1: memref<1x4x256xf32, #tpu.memory_space<vmem>>, %arg2: memref<9x8x4xf32, #tpu.memory_space<vmem>>, %arg3: memref<8x1xf32, #tpu.memory_space<vmem>>, %arg4: memref<9x256x49xf32, #tpu.memory_space<vmem>>, %arg5: memref<9x16x8xf32, #tpu.memory_space<vmem>>, %arg6: memref<16x1xf32, #tpu.memory_space<vmem>>, %arg7: memref<9x49x9xf32, #tpu.memory_space<vmem>>, %arg8: memref<2x9xf32, #tpu.memory_space<vmem>>, %arg9: memref<1x16x2xf32, #tpu.memory_space<vmem>>) attributes {dimension_semantics = [#tpu.dimension_semantics<parallel>], iteration_bounds = array<i64: 2>, scalar_prefetch = 0 : i64, scratch_operands = 0 : i64, tpu.core_type = #tpu.core_type<tc>, window_params = [{transform_indices = @transform_0, window_bounds = array<i64: 1, 4, 256>}, {pipeline_mode = #tpu.pipeline_mode<synchronous>, transform_indices = @transform_1, window_bounds = array<i64: 9, 8, 4>}, {pipeline_mode = #tpu.pipeline_mode<synchronous>, transform_indices = @transform_2, window_bounds = array<i64: 8, 1>}, {pipeline_mode = #tpu.pipeline_mode<synchronous>, transform_indices = @transform_3, window_bounds = array<i64: 9, 256, 49>}, {pipeline_mode = #tpu.pipeline_mode<synchronous>, transform_indices = @transform_4, window_bounds = array<i64: 9, 16, 8>}, {pipeline_mode = #tpu.pipeline_mode<synchronous>, transform_indices = @transform_5, window_bounds = array<i64: 16, 1>}, {pipeline_mode = #tpu.pipeline_mode<synchronous>, transform_indices = @transform_6, window_bounds = array<i64: 9, 49, 9>}, {pipeline_mode = #tpu.pipeline_mode<synchronous>, transform_indices = @transform_7, window_bounds = array<i64: 2, 9>}, {transform_indices = @transform_8, window_bounds = array<i64: 1, 16, 2>}]} {
    %c0 = arith.constant 0 : index
    %c0_0 = arith.constant 0 : index
    %c0_1 = arith.constant 0 : index
    %0 = vector.load %arg1[%c0, %c0_0, %c0_1] : memref<1x4x256xf32, #tpu.memory_space<vmem>>, vector<1x4x256xf32>
    %1 = vector.shape_cast %0 : vector<1x4x256xf32> to vector<4x256xf32>
    %cst = arith.constant 0.000000e+00 : f32
    %2 = vector.broadcast %cst : f32 to vector<8x49xf32>
    %c0_2 = arith.constant 0 : index
    %c0_3 = arith.constant 0 : index
    %c0_4 = arith.constant 0 : index
    %3 = vector.load %arg4[%c0_2, %c0_3, %c0_4] : memref<9x256x49xf32, #tpu.memory_space<vmem>>, vector<1x256x49xf32>
    %4 = vector.shape_cast %3 : vector<1x256x49xf32> to vector<256x49xf32>
    %cst_5 = arith.constant dense<0.000000e+00> : vector<4x49xf32>
    %5 = tpu.matmul %1, %4, %cst_5 {dimension_numbers = #tpu.dot_dimension_numbers<[1], [0], [0], [1], [0, 0, 1, 1], [], []>} : vector<4x256xf32>, vector<256x49xf32>, vector<4x49xf32> -> vector<4x49xf32>
    %c0_6 = arith.constant 0 : index
    %c0_7 = arith.constant 0 : index
    %c0_8 = arith.constant 0 : index
    %6 = vector.load %arg2[%c0_6, %c0_7, %c0_8] : memref<9x8x4xf32, #tpu.memory_space<vmem>>, vector<1x8x4xf32>
    %7 = vector.shape_cast %6 : vector<1x8x4xf32> to vector<8x4xf32>
    %cst_9 = arith.constant dense<0.000000e+00> : vector<8x49xf32>
    %8 = tpu.matmul %7, %5, %cst_9 {dimension_numbers = #tpu.dot_dimension_numbers<[1], [0], [0], [1], [0, 0, 1, 1], [], []>} : vector<8x4xf32>, vector<4x49xf32>, vector<8x49xf32> -> vector<8x49xf32>
    %9 = arith.addf %2, %8 : vector<8x49xf32>
    %c1 = arith.constant 1 : index
    %c0_10 = arith.constant 0 : index
    %c0_11 = arith.constant 0 : index
    %10 = vector.load %arg4[%c1, %c0_10, %c0_11] : memref<9x256x49xf32, #tpu.memory_space<vmem>>, vector<1x256x49xf32>
    %11 = vector.shape_cast %10 : vector<1x256x49xf32> to vector<256x49xf32>
    %cst_12 = arith.constant dense<0.000000e+00> : vector<4x49xf32>
    %12 = tpu.matmul %1, %11, %cst_12 {dimension_numbers = #tpu.dot_dimension_numbers<[1], [0], [0], [1], [0, 0, 1, 1], [], []>} : vector<4x256xf32>, vector<256x49xf32>, vector<4x49xf32> -> vector<4x49xf32>
    %c1_13 = arith.constant 1 : index
    %c0_14 = arith.constant 0 : index
    %c0_15 = arith.constant 0 : index
    %13 = vector.load %arg2[%c1_13, %c0_14, %c0_15] : memref<9x8x4xf32, #tpu.memory_space<vmem>>, vector<1x8x4xf32>
    %14 = vector.shape_cast %13 : vector<1x8x4xf32> to vector<8x4xf32>
    %cst_16 = arith.constant dense<0.000000e+00> : vector<8x49xf32>
    %15 = tpu.matmul %14, %12, %cst_16 {dimension_numbers = #tpu.dot_dimension_numbers<[1], [0], [0], [1], [0, 0, 1, 1], [], []>} : vector<8x4xf32>, vector<4x49xf32>, vector<8x49xf32> -> vector<8x49xf32>
    %16 = arith.addf %9, %15 : vector<8x49xf32>
    %c2 = arith.constant 2 : index
    %c0_17 = arith.constant 0 : index
    %c0_18 = arith.constant 0 : index
    %17 = vector.load %arg4[%c2, %c0_17, %c0_18] : memref<9x256x49xf32, #tpu.memory_space<vmem>>, vector<1x256x49xf32>
    %18 = vector.shape_cast %17 : vector<1x256x49xf32> to vector<256x49xf32>
    %cst_19 = arith.constant dense<0.000000e+00> : vector<4x49xf32>
    %19 = tpu.matmul %1, %18, %cst_19 {dimension_numbers = #tpu.dot_dimension_numbers<[1], [0], [0], [1], [0, 0, 1, 1], [], []>} : vector<4x256xf32>, vector<256x49xf32>, vector<4x49xf32> -> vector<4x49xf32>
    %c2_20 = arith.constant 2 : index
    %c0_21 = arith.constant 0 : index
    %c0_22 = arith.constant 0 : index
    %20 = vector.load %arg2[%c2_20, %c0_21, %c0_22] : memref<9x8x4xf32, #tpu.memory_space<vmem>>, vector<1x8x4xf32>
    %21 = vector.shape_cast %20 : vector<1x8x4xf32> to vector<8x4xf32>
    %cst_23 = arith.constant dense<0.000000e+00> : vector<8x49xf32>
    %22 = tpu.matmul %21, %19, %cst_23 {dimension_numbers = #tpu.dot_dimension_numbers<[1], [0], [0], [1], [0, 0, 1, 1], [], []>} : vector<8x4xf32>, vector<4x49xf32>, vector<8x49xf32> -> vector<8x49xf32>
    %23 = arith.addf %16, %22 : vector<8x49xf32>
    %c3 = arith.constant 3 : index
    %c0_24 = arith.constant 0 : index
    %c0_25 = arith.constant 0 : index
    %24 = vector.load %arg4[%c3, %c0_24, %c0_25] : memref<9x256x49xf32, #tpu.memory_space<vmem>>, vector<1x256x49xf32>
    %25 = vector.shape_cast %24 : vector<1x256x49xf32> to vector<256x49xf32>
    %cst_26 = arith.constant dense<0.000000e+00> : vector<4x49xf32>
    %26 = tpu.matmul %1, %25, %cst_26 {dimension_numbers = #tpu.dot_dimension_numbers<[1], [0], [0], [1], [0, 0, 1, 1], [], []>} : vector<4x256xf32>, vector<256x49xf32>, vector<4x49xf32> -> vector<4x49xf32>
    %c3_27 = arith.constant 3 : index
    %c0_28 = arith.constant 0 : index
    %c0_29 = arith.constant 0 : index
    %27 = vector.load %arg2[%c3_27, %c0_28, %c0_29] : memref<9x8x4xf32, #tpu.memory_space<vmem>>, vector<1x8x4xf32>
    %28 = vector.shape_cast %27 : vector<1x8x4xf32> to vector<8x4xf32>
    %cst_30 = arith.constant dense<0.000000e+00> : vector<8x49xf32>
    %29 = tpu.matmul %28, %26, %cst_30 {dimension_numbers = #tpu.dot_dimension_numbers<[1], [0], [0], [1], [0, 0, 1, 1], [], []>} : vector<8x4xf32>, vector<4x49xf32>, vector<8x49xf32> -> vector<8x49xf32>
    %30 = arith.addf %23, %29 : vector<8x49xf32>
    %c4 = arith.constant 4 : index
    %c0_31 = arith.constant 0 : index
    %c0_32 = arith.constant 0 : index
    %31 = vector.load %arg4[%c4, %c0_31, %c0_32] : memref<9x256x49xf32, #tpu.memory_space<vmem>>, vector<1x256x49xf32>
    %32 = vector.shape_cast %31 : vector<1x256x49xf32> to vector<256x49xf32>
    %cst_33 = arith.constant dense<0.000000e+00> : vector<4x49xf32>
    %33 = tpu.matmul %1, %32, %cst_33 {dimension_numbers = #tpu.dot_dimension_numbers<[1], [0], [0], [1], [0, 0, 1, 1], [], []>} : vector<4x256xf32>, vector<256x49xf32>, vector<4x49xf32> -> vector<4x49xf32>
    %c4_34 = arith.constant 4 : index
    %c0_35 = arith.constant 0 : index
    %c0_36 = arith.constant 0 : index
    %34 = vector.load %arg2[%c4_34, %c0_35, %c0_36] : memref<9x8x4xf32, #tpu.memory_space<vmem>>, vector<1x8x4xf32>
    %35 = vector.shape_cast %34 : vector<1x8x4xf32> to vector<8x4xf32>
    %cst_37 = arith.constant dense<0.000000e+00> : vector<8x49xf32>
    %36 = tpu.matmul %35, %33, %cst_37 {dimension_numbers = #tpu.dot_dimension_numbers<[1], [0], [0], [1], [0, 0, 1, 1], [], []>} : vector<8x4xf32>, vector<4x49xf32>, vector<8x49xf32> -> vector<8x49xf32>
    %37 = arith.addf %30, %36 : vector<8x49xf32>
    %c5 = arith.constant 5 : index
    %c0_38 = arith.constant 0 : index
    %c0_39 = arith.constant 0 : index
    %38 = vector.load %arg4[%c5, %c0_38, %c0_39] : memref<9x256x49xf32, #tpu.memory_space<vmem>>, vector<1x256x49xf32>
    %39 = vector.shape_cast %38 : vector<1x256x49xf32> to vector<256x49xf32>
    %cst_40 = arith.constant dense<0.000000e+00> : vector<4x49xf32>
    %40 = tpu.matmul %1, %39, %cst_40 {dimension_numbers = #tpu.dot_dimension_numbers<[1], [0], [0], [1], [0, 0, 1, 1], [], []>} : vector<4x256xf32>, vector<256x49xf32>, vector<4x49xf32> -> vector<4x49xf32>
    %c5_41 = arith.constant 5 : index
    %c0_42 = arith.constant 0 : index
    %c0_43 = arith.constant 0 : index
    %41 = vector.load %arg2[%c5_41, %c0_42, %c0_43] : memref<9x8x4xf32, #tpu.memory_space<vmem>>, vector<1x8x4xf32>
    %42 = vector.shape_cast %41 : vector<1x8x4xf32> to vector<8x4xf32>
    %cst_44 = arith.constant dense<0.000000e+00> : vector<8x49xf32>
    %43 = tpu.matmul %42, %40, %cst_44 {dimension_numbers = #tpu.dot_dimension_numbers<[1], [0], [0], [1], [0, 0, 1, 1], [], []>} : vector<8x4xf32>, vector<4x49xf32>, vector<8x49xf32> -> vector<8x49xf32>
    %44 = arith.addf %37, %43 : vector<8x49xf32>
    %c6 = arith.constant 6 : index
    %c0_45 = arith.constant 0 : index
    %c0_46 = arith.constant 0 : index
    %45 = vector.load %arg4[%c6, %c0_45, %c0_46] : memref<9x256x49xf32, #tpu.memory_space<vmem>>, vector<1x256x49xf32>
    %46 = vector.shape_cast %45 : vector<1x256x49xf32> to vector<256x49xf32>
    %cst_47 = arith.constant dense<0.000000e+00> : vector<4x49xf32>
    %47 = tpu.matmul %1, %46, %cst_47 {dimension_numbers = #tpu.dot_dimension_numbers<[1], [0], [0], [1], [0, 0, 1, 1], [], []>} : vector<4x256xf32>, vector<256x49xf32>, vector<4x49xf32> -> vector<4x49xf32>
    %c6_48 = arith.constant 6 : index
    %c0_49 = arith.constant 0 : index
    %c0_50 = arith.constant 0 : index
    %48 = vector.load %arg2[%c6_48, %c0_49, %c0_50] : memref<9x8x4xf32, #tpu.memory_space<vmem>>, vector<1x8x4xf32>
    %49 = vector.shape_cast %48 : vector<1x8x4xf32> to vector<8x4xf32>
    %cst_51 = arith.constant dense<0.000000e+00> : vector<8x49xf32>
    %50 = tpu.matmul %49, %47, %cst_51 {dimension_numbers = #tpu.dot_dimension_numbers<[1], [0], [0], [1], [0, 0, 1, 1], [], []>} : vector<8x4xf32>, vector<4x49xf32>, vector<8x49xf32> -> vector<8x49xf32>
    %51 = arith.addf %44, %50 : vector<8x49xf32>
    %c7 = arith.constant 7 : index
    %c0_52 = arith.constant 0 : index
    %c0_53 = arith.constant 0 : index
    %52 = vector.load %arg4[%c7, %c0_52, %c0_53] : memref<9x256x49xf32, #tpu.memory_space<vmem>>, vector<1x256x49xf32>
    %53 = vector.shape_cast %52 : vector<1x256x49xf32> to vector<256x49xf32>
    %cst_54 = arith.constant dense<0.000000e+00> : vector<4x49xf32>
    %54 = tpu.matmul %1, %53, %cst_54 {dimension_numbers = #tpu.dot_dimension_numbers<[1], [0], [0], [1], [0, 0, 1, 1], [], []>} : vector<4x256xf32>, vector<256x49xf32>, vector<4x49xf32> -> vector<4x49xf32>
    %c7_55 = arith.constant 7 : index
    %c0_56 = arith.constant 0 : index
    %c0_57 = arith.constant 0 : index
    %55 = vector.load %arg2[%c7_55, %c0_56, %c0_57] : memref<9x8x4xf32, #tpu.memory_space<vmem>>, vector<1x8x4xf32>
    %56 = vector.shape_cast %55 : vector<1x8x4xf32> to vector<8x4xf32>
    %cst_58 = arith.constant dense<0.000000e+00> : vector<8x49xf32>
    %57 = tpu.matmul %56, %54, %cst_58 {dimension_numbers = #tpu.dot_dimension_numbers<[1], [0], [0], [1], [0, 0, 1, 1], [], []>} : vector<8x4xf32>, vector<4x49xf32>, vector<8x49xf32> -> vector<8x49xf32>
    %58 = arith.addf %51, %57 : vector<8x49xf32>
    %c8 = arith.constant 8 : index
    %c0_59 = arith.constant 0 : index
    %c0_60 = arith.constant 0 : index
    %59 = vector.load %arg4[%c8, %c0_59, %c0_60] : memref<9x256x49xf32, #tpu.memory_space<vmem>>, vector<1x256x49xf32>
    %60 = vector.shape_cast %59 : vector<1x256x49xf32> to vector<256x49xf32>
    %cst_61 = arith.constant dense<0.000000e+00> : vector<4x49xf32>
    %61 = tpu.matmul %1, %60, %cst_61 {dimension_numbers = #tpu.dot_dimension_numbers<[1], [0], [0], [1], [0, 0, 1, 1], [], []>} : vector<4x256xf32>, vector<256x49xf32>, vector<4x49xf32> -> vector<4x49xf32>
    %c8_62 = arith.constant 8 : index
    %c0_63 = arith.constant 0 : index
    %c0_64 = arith.constant 0 : index
    %62 = vector.load %arg2[%c8_62, %c0_63, %c0_64] : memref<9x8x4xf32, #tpu.memory_space<vmem>>, vector<1x8x4xf32>
    %63 = vector.shape_cast %62 : vector<1x8x4xf32> to vector<8x4xf32>
    %cst_65 = arith.constant dense<0.000000e+00> : vector<8x49xf32>
    %64 = tpu.matmul %63, %61, %cst_65 {dimension_numbers = #tpu.dot_dimension_numbers<[1], [0], [0], [1], [0, 0, 1, 1], [], []>} : vector<8x4xf32>, vector<4x49xf32>, vector<8x49xf32> -> vector<8x49xf32>
    %65 = arith.addf %58, %64 : vector<8x49xf32>
    %c0_66 = arith.constant 0 : index
    %c0_67 = arith.constant 0 : index
    %66 = vector.load %arg3[%c0_66, %c0_67] : memref<8x1xf32, #tpu.memory_space<vmem>>, vector<8x1xf32>
    %67 = vector.broadcast %66 : vector<8x1xf32> to vector<8x49xf32>
    %68 = arith.addf %65, %67 : vector<8x49xf32>
    %cst_68 = arith.constant 0.000000e+00 : f32
    %69 = vector.broadcast %cst_68 : f32 to vector<8x49xf32>
    %70 = arith.maximumf %68, %69 : vector<8x49xf32>
    %cst_69 = arith.constant 0.000000e+00 : f32
    %71 = vector.broadcast %cst_69 : f32 to vector<16x9xf32>
    %c0_70 = arith.constant 0 : index
    %c0_71 = arith.constant 0 : index
    %c0_72 = arith.constant 0 : index
    %72 = vector.load %arg7[%c0_70, %c0_71, %c0_72] : memref<9x49x9xf32, #tpu.memory_space<vmem>>, vector<1x49x9xf32>
    %73 = vector.shape_cast %72 : vector<1x49x9xf32> to vector<49x9xf32>
    %cst_73 = arith.constant dense<0.000000e+00> : vector<8x9xf32>
    %74 = tpu.matmul %70, %73, %cst_73 {dimension_numbers = #tpu.dot_dimension_numbers<[1], [0], [0], [1], [0, 0, 1, 1], [], []>} : vector<8x49xf32>, vector<49x9xf32>, vector<8x9xf32> -> vector<8x9xf32>
    %c0_74 = arith.constant 0 : index
    %c0_75 = arith.constant 0 : index
    %c0_76 = arith.constant 0 : index
    %75 = vector.load %arg5[%c0_74, %c0_75, %c0_76] : memref<9x16x8xf32, #tpu.memory_space<vmem>>, vector<1x16x8xf32>
    %76 = vector.shape_cast %75 : vector<1x16x8xf32> to vector<16x8xf32>
    %cst_77 = arith.constant dense<0.000000e+00> : vector<16x9xf32>
    %77 = tpu.matmul %76, %74, %cst_77 {dimension_numbers = #tpu.dot_dimension_numbers<[1], [0], [0], [1], [0, 0, 1, 1], [], []>} : vector<16x8xf32>, vector<8x9xf32>, vector<16x9xf32> -> vector<16x9xf32>
    %78 = arith.addf %71, %77 : vector<16x9xf32>
    %c1_78 = arith.constant 1 : index
    %c0_79 = arith.constant 0 : index
    %c0_80 = arith.constant 0 : index
    %79 = vector.load %arg7[%c1_78, %c0_79, %c0_80] : memref<9x49x9xf32, #tpu.memory_space<vmem>>, vector<1x49x9xf32>
    %80 = vector.shape_cast %79 : vector<1x49x9xf32> to vector<49x9xf32>
    %cst_81 = arith.constant dense<0.000000e+00> : vector<8x9xf32>
    %81 = tpu.matmul %70, %80, %cst_81 {dimension_numbers = #tpu.dot_dimension_numbers<[1], [0], [0], [1], [0, 0, 1, 1], [], []>} : vector<8x49xf32>, vector<49x9xf32>, vector<8x9xf32> -> vector<8x9xf32>
    %c1_82 = arith.constant 1 : index
    %c0_83 = arith.constant 0 : index
    %c0_84 = arith.constant 0 : index
    %82 = vector.load %arg5[%c1_82, %c0_83, %c0_84] : memref<9x16x8xf32, #tpu.memory_space<vmem>>, vector<1x16x8xf32>
    %83 = vector.shape_cast %82 : vector<1x16x8xf32> to vector<16x8xf32>
    %cst_85 = arith.constant dense<0.000000e+00> : vector<16x9xf32>
    %84 = tpu.matmul %83, %81, %cst_85 {dimension_numbers = #tpu.dot_dimension_numbers<[1], [0], [0], [1], [0, 0, 1, 1], [], []>} : vector<16x8xf32>, vector<8x9xf32>, vector<16x9xf32> -> vector<16x9xf32>
    %85 = arith.addf %78, %84 : vector<16x9xf32>
    %c2_86 = arith.constant 2 : index
    %c0_87 = arith.constant 0 : index
    %c0_88 = arith.constant 0 : index
    %86 = vector.load %arg7[%c2_86, %c0_87, %c0_88] : memref<9x49x9xf32, #tpu.memory_space<vmem>>, vector<1x49x9xf32>
    %87 = vector.shape_cast %86 : vector<1x49x9xf32> to vector<49x9xf32>
    %cst_89 = arith.constant dense<0.000000e+00> : vector<8x9xf32>
    %88 = tpu.matmul %70, %87, %cst_89 {dimension_numbers = #tpu.dot_dimension_numbers<[1], [0], [0], [1], [0, 0, 1, 1], [], []>} : vector<8x49xf32>, vector<49x9xf32>, vector<8x9xf32> -> vector<8x9xf32>
    %c2_90 = arith.constant 2 : index
    %c0_91 = arith.constant 0 : index
    %c0_92 = arith.constant 0 : index
    %89 = vector.load %arg5[%c2_90, %c0_91, %c0_92] : memref<9x16x8xf32, #tpu.memory_space<vmem>>, vector<1x16x8xf32>
    %90 = vector.shape_cast %89 : vector<1x16x8xf32> to vector<16x8xf32>
    %cst_93 = arith.constant dense<0.000000e+00> : vector<16x9xf32>
    %91 = tpu.matmul %90, %88, %cst_93 {dimension_numbers = #tpu.dot_dimension_numbers<[1], [0], [0], [1], [0, 0, 1, 1], [], []>} : vector<16x8xf32>, vector<8x9xf32>, vector<16x9xf32> -> vector<16x9xf32>
    %92 = arith.addf %85, %91 : vector<16x9xf32>
    %c3_94 = arith.constant 3 : index
    %c0_95 = arith.constant 0 : index
    %c0_96 = arith.constant 0 : index
    %93 = vector.load %arg7[%c3_94, %c0_95, %c0_96] : memref<9x49x9xf32, #tpu.memory_space<vmem>>, vector<1x49x9xf32>
    %94 = vector.shape_cast %93 : vector<1x49x9xf32> to vector<49x9xf32>
    %cst_97 = arith.constant dense<0.000000e+00> : vector<8x9xf32>
    %95 = tpu.matmul %70, %94, %cst_97 {dimension_numbers = #tpu.dot_dimension_numbers<[1], [0], [0], [1], [0, 0, 1, 1], [], []>} : vector<8x49xf32>, vector<49x9xf32>, vector<8x9xf32> -> vector<8x9xf32>
    %c3_98 = arith.constant 3 : index
    %c0_99 = arith.constant 0 : index
    %c0_100 = arith.constant 0 : index
    %96 = vector.load %arg5[%c3_98, %c0_99, %c0_100] : memref<9x16x8xf32, #tpu.memory_space<vmem>>, vector<1x16x8xf32>
    %97 = vector.shape_cast %96 : vector<1x16x8xf32> to vector<16x8xf32>
    %cst_101 = arith.constant dense<0.000000e+00> : vector<16x9xf32>
    %98 = tpu.matmul %97, %95, %cst_101 {dimension_numbers = #tpu.dot_dimension_numbers<[1], [0], [0], [1], [0, 0, 1, 1], [], []>} : vector<16x8xf32>, vector<8x9xf32>, vector<16x9xf32> -> vector<16x9xf32>
    %99 = arith.addf %92, %98 : vector<16x9xf32>
    %c4_102 = arith.constant 4 : index
    %c0_103 = arith.constant 0 : index
    %c0_104 = arith.constant 0 : index
    %100 = vector.load %arg7[%c4_102, %c0_103, %c0_104] : memref<9x49x9xf32, #tpu.memory_space<vmem>>, vector<1x49x9xf32>
    %101 = vector.shape_cast %100 : vector<1x49x9xf32> to vector<49x9xf32>
    %cst_105 = arith.constant dense<0.000000e+00> : vector<8x9xf32>
    %102 = tpu.matmul %70, %101, %cst_105 {dimension_numbers = #tpu.dot_dimension_numbers<[1], [0], [0], [1], [0, 0, 1, 1], [], []>} : vector<8x49xf32>, vector<49x9xf32>, vector<8x9xf32> -> vector<8x9xf32>
    %c4_106 = arith.constant 4 : index
    %c0_107 = arith.constant 0 : index
    %c0_108 = arith.constant 0 : index
    %103 = vector.load %arg5[%c4_106, %c0_107, %c0_108] : memref<9x16x8xf32, #tpu.memory_space<vmem>>, vector<1x16x8xf32>
    %104 = vector.shape_cast %103 : vector<1x16x8xf32> to vector<16x8xf32>
    %cst_109 = arith.constant dense<0.000000e+00> : vector<16x9xf32>
    %105 = tpu.matmul %104, %102, %cst_109 {dimension_numbers = #tpu.dot_dimension_numbers<[1], [0], [0], [1], [0, 0, 1, 1], [], []>} : vector<16x8xf32>, vector<8x9xf32>, vector<16x9xf32> -> vector<16x9xf32>
    %106 = arith.addf %99, %105 : vector<16x9xf32>
    %c5_110 = arith.constant 5 : index
    %c0_111 = arith.constant 0 : index
    %c0_112 = arith.constant 0 : index
    %107 = vector.load %arg7[%c5_110, %c0_111, %c0_112] : memref<9x49x9xf32, #tpu.memory_space<vmem>>, vector<1x49x9xf32>
    %108 = vector.shape_cast %107 : vector<1x49x9xf32> to vector<49x9xf32>
    %cst_113 = arith.constant dense<0.000000e+00> : vector<8x9xf32>
    %109 = tpu.matmul %70, %108, %cst_113 {dimension_numbers = #tpu.dot_dimension_numbers<[1], [0], [0], [1], [0, 0, 1, 1], [], []>} : vector<8x49xf32>, vector<49x9xf32>, vector<8x9xf32> -> vector<8x9xf32>
    %c5_114 = arith.constant 5 : index
    %c0_115 = arith.constant 0 : index
    %c0_116 = arith.constant 0 : index
    %110 = vector.load %arg5[%c5_114, %c0_115, %c0_116] : memref<9x16x8xf32, #tpu.memory_space<vmem>>, vector<1x16x8xf32>
    %111 = vector.shape_cast %110 : vector<1x16x8xf32> to vector<16x8xf32>
    %cst_117 = arith.constant dense<0.000000e+00> : vector<16x9xf32>
    %112 = tpu.matmul %111, %109, %cst_117 {dimension_numbers = #tpu.dot_dimension_numbers<[1], [0], [0], [1], [0, 0, 1, 1], [], []>} : vector<16x8xf32>, vector<8x9xf32>, vector<16x9xf32> -> vector<16x9xf32>
    %113 = arith.addf %106, %112 : vector<16x9xf32>
    %c6_118 = arith.constant 6 : index
    %c0_119 = arith.constant 0 : index
    %c0_120 = arith.constant 0 : index
    %114 = vector.load %arg7[%c6_118, %c0_119, %c0_120] : memref<9x49x9xf32, #tpu.memory_space<vmem>>, vector<1x49x9xf32>
    %115 = vector.shape_cast %114 : vector<1x49x9xf32> to vector<49x9xf32>
    %cst_121 = arith.constant dense<0.000000e+00> : vector<8x9xf32>
    %116 = tpu.matmul %70, %115, %cst_121 {dimension_numbers = #tpu.dot_dimension_numbers<[1], [0], [0], [1], [0, 0, 1, 1], [], []>} : vector<8x49xf32>, vector<49x9xf32>, vector<8x9xf32> -> vector<8x9xf32>
    %c6_122 = arith.constant 6 : index
    %c0_123 = arith.constant 0 : index
    %c0_124 = arith.constant 0 : index
    %117 = vector.load %arg5[%c6_122, %c0_123, %c0_124] : memref<9x16x8xf32, #tpu.memory_space<vmem>>, vector<1x16x8xf32>
    %118 = vector.shape_cast %117 : vector<1x16x8xf32> to vector<16x8xf32>
    %cst_125 = arith.constant dense<0.000000e+00> : vector<16x9xf32>
    %119 = tpu.matmul %118, %116, %cst_125 {dimension_numbers = #tpu.dot_dimension_numbers<[1], [0], [0], [1], [0, 0, 1, 1], [], []>} : vector<16x8xf32>, vector<8x9xf32>, vector<16x9xf32> -> vector<16x9xf32>
    %120 = arith.addf %113, %119 : vector<16x9xf32>
    %c7_126 = arith.constant 7 : index
    %c0_127 = arith.constant 0 : index
    %c0_128 = arith.constant 0 : index
    %121 = vector.load %arg7[%c7_126, %c0_127, %c0_128] : memref<9x49x9xf32, #tpu.memory_space<vmem>>, vector<1x49x9xf32>
    %122 = vector.shape_cast %121 : vector<1x49x9xf32> to vector<49x9xf32>
    %cst_129 = arith.constant dense<0.000000e+00> : vector<8x9xf32>
    %123 = tpu.matmul %70, %122, %cst_129 {dimension_numbers = #tpu.dot_dimension_numbers<[1], [0], [0], [1], [0, 0, 1, 1], [], []>} : vector<8x49xf32>, vector<49x9xf32>, vector<8x9xf32> -> vector<8x9xf32>
    %c7_130 = arith.constant 7 : index
    %c0_131 = arith.constant 0 : index
    %c0_132 = arith.constant 0 : index
    %124 = vector.load %arg5[%c7_130, %c0_131, %c0_132] : memref<9x16x8xf32, #tpu.memory_space<vmem>>, vector<1x16x8xf32>
    %125 = vector.shape_cast %124 : vector<1x16x8xf32> to vector<16x8xf32>
    %cst_133 = arith.constant dense<0.000000e+00> : vector<16x9xf32>
    %126 = tpu.matmul %125, %123, %cst_133 {dimension_numbers = #tpu.dot_dimension_numbers<[1], [0], [0], [1], [0, 0, 1, 1], [], []>} : vector<16x8xf32>, vector<8x9xf32>, vector<16x9xf32> -> vector<16x9xf32>
    %127 = arith.addf %120, %126 : vector<16x9xf32>
    %c8_134 = arith.constant 8 : index
    %c0_135 = arith.constant 0 : index
    %c0_136 = arith.constant 0 : index
    %128 = vector.load %arg7[%c8_134, %c0_135, %c0_136] : memref<9x49x9xf32, #tpu.memory_space<vmem>>, vector<1x49x9xf32>
    %129 = vector.shape_cast %128 : vector<1x49x9xf32> to vector<49x9xf32>
    %cst_137 = arith.constant dense<0.000000e+00> : vector<8x9xf32>
    %130 = tpu.matmul %70, %129, %cst_137 {dimension_numbers = #tpu.dot_dimension_numbers<[1], [0], [0], [1], [0, 0, 1, 1], [], []>} : vector<8x49xf32>, vector<49x9xf32>, vector<8x9xf32> -> vector<8x9xf32>
    %c8_138 = arith.constant 8 : index
    %c0_139 = arith.constant 0 : index
    %c0_140 = arith.constant 0 : index
    %131 = vector.load %arg5[%c8_138, %c0_139, %c0_140] : memref<9x16x8xf32, #tpu.memory_space<vmem>>, vector<1x16x8xf32>
    %132 = vector.shape_cast %131 : vector<1x16x8xf32> to vector<16x8xf32>
    %cst_141 = arith.constant dense<0.000000e+00> : vector<16x9xf32>
    %133 = tpu.matmul %132, %130, %cst_141 {dimension_numbers = #tpu.dot_dimension_numbers<[1], [0], [0], [1], [0, 0, 1, 1], [], []>} : vector<16x8xf32>, vector<8x9xf32>, vector<16x9xf32> -> vector<16x9xf32>
    %134 = arith.addf %127, %133 : vector<16x9xf32>
    %c0_142 = arith.constant 0 : index
    %c0_143 = arith.constant 0 : index
    %135 = vector.load %arg6[%c0_142, %c0_143] : memref<16x1xf32, #tpu.memory_space<vmem>>, vector<16x1xf32>
    %136 = vector.broadcast %135 : vector<16x1xf32> to vector<16x9xf32>
    %137 = arith.addf %134, %136 : vector<16x9xf32>
    %cst_144 = arith.constant dense<0xFF800000> : vector<16xf32>
    %138 = vector.multi_reduction <maximumf>, %137, %cst_144 [1] : vector<16x9xf32> to vector<16xf32>
    %139 = vector.shape_cast %138 : vector<16xf32> to vector<16x1xf32>
    %140 = vector.broadcast %139 : vector<16x1xf32> to vector<16x9xf32>
    %141 = arith.subf %137, %140 : vector<16x9xf32>
    %142 = math.exp %141 : vector<16x9xf32>
    %cst_145 = arith.constant dense<0.000000e+00> : vector<16xf32>
    %143 = vector.multi_reduction <add>, %142, %cst_145 [1] : vector<16x9xf32> to vector<16xf32>
    %144 = vector.shape_cast %143 : vector<16xf32> to vector<16x1xf32>
    %145 = tpu.reciprocal %144 {approx = true} : vector<16x1xf32> -> vector<16x1xf32>
    %146 = vector.broadcast %145 : vector<16x1xf32> to vector<16x9xf32>
    %147 = arith.mulf %142, %146 : vector<16x9xf32>
    %c0_146 = arith.constant 0 : index
    %c0_147 = arith.constant 0 : index
    %148 = vector.load %arg8[%c0_146, %c0_147] : memref<2x9xf32, #tpu.memory_space<vmem>>, vector<1x9xf32>
    %149 = vector.broadcast %148 : vector<1x9xf32> to vector<16x9xf32>
    %150 = arith.mulf %149, %147 : vector<16x9xf32>
    %cst_148 = arith.constant dense<0.000000e+00> : vector<16xf32>
    %151 = vector.multi_reduction <add>, %150, %cst_148 [1] : vector<16x9xf32> to vector<16xf32>
    %152 = vector.shape_cast %151 : vector<16xf32> to vector<16x1xf32>
    %c1_149 = arith.constant 1 : index
    %c0_150 = arith.constant 0 : index
    %153 = vector.load %arg8[%c1_149, %c0_150] : memref<2x9xf32, #tpu.memory_space<vmem>>, vector<1x9xf32>
    %154 = vector.broadcast %153 : vector<1x9xf32> to vector<16x9xf32>
    %155 = arith.mulf %154, %147 : vector<16x9xf32>
    %cst_151 = arith.constant dense<0.000000e+00> : vector<16xf32>
    %156 = vector.multi_reduction <add>, %155, %cst_151 [1] : vector<16x9xf32> to vector<16xf32>
    %157 = vector.shape_cast %156 : vector<16xf32> to vector<16x1xf32>
    %158 = tpu.concatenate %152, %157 in 1 : vector<16x1xf32>, vector<16x1xf32> -> vector<16x2xf32>
    %c0_152 = arith.constant 0 : index
    %c0_153 = arith.constant 0 : index
    %c0_154 = arith.constant 0 : index
    %159 = vector.load %arg9[%c0_152, %c0_153, %c0_154] : memref<1x16x2xf32, #tpu.memory_space<vmem>>, vector<1x16x2xf32>
    %160 = vector.shape_cast %159 : vector<1x16x2xf32> to vector<16x2xf32>
    %161 = vector.shape_cast %158 : vector<16x2xf32> to vector<1x16x2xf32>
    tpu.vector_store %arg9[%c0_152, %c0_153, %c0_154], %161 {strides = array<i32>} : memref<1x16x2xf32, #tpu.memory_space<vmem>>, vector<1x16x2xf32>,
    return
  }
  func.func @transform_0(%arg0: i32) -> (i32, i32, i32) {
    %c0_i32 = arith.constant 0 : i32
    %c0_i32_0 = arith.constant 0 : i32
    %c0_i32_1 = arith.constant 0 : i32
    return %arg0, %c0_i32, %c0_i32_0 : i32, i32, i32
  }
  func.func @transform_1(%arg0: i32) -> (i32, i32, i32) {
    %c0_i32 = arith.constant 0 : i32
    %c0_i32_0 = arith.constant 0 : i32
    %c0_i32_1 = arith.constant 0 : i32
    %c0_i32_2 = arith.constant 0 : i32
    return %c0_i32, %c0_i32_0, %c0_i32_1 : i32, i32, i32
  }
  func.func @transform_2(%arg0: i32) -> (i32, i32) {
    %c0_i32 = arith.constant 0 : i32
    %c0_i32_0 = arith.constant 0 : i32
    %c0_i32_1 = arith.constant 0 : i32
    return %c0_i32, %c0_i32_0 : i32, i32
  }
  func.func @transform_3(%arg0: i32) -> (i32, i32, i32) {
    %c0_i32 = arith.constant 0 : i32
    %c0_i32_0 = arith.constant 0 : i32
    %c0_i32_1 = arith.constant 0 : i32
    %c0_i32_2 = arith.constant 0 : i32
    return %c0_i32, %c0_i32_0, %c0_i32_1 : i32, i32, i32
  }
  func.func @transform_4(%arg0: i32) -> (i32, i32, i32) {
    %c0_i32 = arith.constant 0 : i32
    %c0_i32_0 = arith.constant 0 : i32
    %c0_i32_1 = arith.constant 0 : i32
    %c0_i32_2 = arith.constant 0 : i32
    return %c0_i32, %c0_i32_0, %c0_i32_1 : i32, i32, i32
  }
  func.func @transform_5(%arg0: i32) -> (i32, i32) {
    %c0_i32 = arith.constant 0 : i32
    %c0_i32_0 = arith.constant 0 : i32
    %c0_i32_1 = arith.constant 0 : i32
    return %c0_i32, %c0_i32_0 : i32, i32
  }
  func.func @transform_6(%arg0: i32) -> (i32, i32, i32) {
    %c0_i32 = arith.constant 0 : i32
    %c0_i32_0 = arith.constant 0 : i32
    %c0_i32_1 = arith.constant 0 : i32
    %c0_i32_2 = arith.constant 0 : i32
    return %c0_i32, %c0_i32_0, %c0_i32_1 : i32, i32, i32
  }
  func.func @transform_7(%arg0: i32) -> (i32, i32) {
    %c0_i32 = arith.constant 0 : i32
    %c0_i32_0 = arith.constant 0 : i32
    %c0_i32_1 = arith.constant 0 : i32
    return %c0_i32, %c0_i32_0 : i32, i32
  }
  func.func @transform_8(%arg0: i32) -> (i32, i32, i32) {
    %c0_i32 = arith.constant 0 : i32
    %c0_i32_0 = arith.constant 0 : i32
    %c0_i32_1 = arith.constant 0 : i32
    return %arg0, %c0_i32, %c0_i32_0 : i32, i32, i32
  }
}

</mosaic_0001>

<llo_original>
// kernel: forward.1
$region0: #{forward.1}
  #allocation0 [shape = 'u32[]', space=smem, size = 0x4, offset = 0x4, fixed_abs, tag = 'smem constant byte address 0x4 - core index']
  #allocation1 [shape = 'u32[72,128]{1,0:T(1,128)}', space=vmem, size = 0x9000, scoped, tag = 'internal scratch']
  %s0 = inlined_call_operand.vmem [shape: f32[2,4,256], index: 0, kind: input, shape index: {}]
  %s1 = inlined_call_operand.vmem [shape: f32[9,8,4], index: 1, kind: input, shape index: {}]
  %s2 = inlined_call_operand.vmem [shape: f32[8,1], index: 2, kind: input, shape index: {}]
  %s3 = inlined_call_operand.hbm [shape: f32[9,256,49], index: 3, kind: input, shape index: {}]
  %s4 = inlined_call_operand.vmem [shape: f32[9,16,8], index: 4, kind: input, shape index: {}]
  %s5 = inlined_call_operand.vmem [shape: f32[16,1], index: 5, kind: input, shape index: {}]
  %s6 = inlined_call_operand.hbm [shape: f32[9,49,9], index: 6, kind: input, shape index: {}]
  %s7 = inlined_call_operand.hbm [shape: f32[2,9], index: 7, kind: input, shape index: {}]
  %s8 = inlined_call_operand.vmem [shape: f32[2,16,2], index: 8, kind: output, shape index: {}]
  %s9 = sld [smem:[#allocation0]]
  $region77: #{forward.1} parent=0
    _
  %s11 = ssub.s32 1, %s9
  %s12 = scalar_select 0, %s11, %s9
  $region1: #{forward.1} parent=0
    #allocation2 [shape = 'u8[1179648]{0}', space=vmem, size = 0x120000, scoped, tag = 'input window, operand 3, single buffered']
    #allocation3 [shape = 's32[2]{0}', space=sflag, size = 0x8, scoped, tag = 'scoped memory for forward.1']
    #allocation4 [shape = 'u8[258048]{0}', space=vmem, size = 0x3f000, scoped, tag = 'input window, operand 6, single buffered']
    #allocation5 [shape = 's32[1]{0}', space=sflag, size = 0x4, scoped, tag = 'scoped memory for forward.1']
    #allocation6 [shape = 'u8[1024]{0}', space=vmem, size = 0x400, scoped, tag = 'input window, operand 7, single buffered']
    %13 = vsyncpa [#allocation3], 0
    %14 = vsyncpa [#allocation5], 0
    loop: start=0, step=1, limit=4
    $region2: #{forward.1} parent=1 // loop_pre_header
      _
    $region3: #{forward.1} parent=1 // loop_header
      %s16 = sphi 0, %s20
      %p17 = scmp.ge.s32.totalorder %s16, 4
      %s26 = sphi 0, %s28
      %s29 = sphi 0, %s26
      %s30 = sphi 0, %s29
      %s46 = sphi 0, %s30
      %s50 = sphi 0, %s50
      %s52 = sphi 0, %s50
      %s53 = sphi 0, %s52
      %s67 = sphi 0, %s53
      %s71 = sphi 0, %s71
      %s73 = sphi 0, %s71
      %s74 = sphi 0, %s73
      %s88 = sphi 0, %s74
      %s92 = sphi 0, %s92
      %s94 = sphi 0, %s92
      %s95 = sphi 0, %s94
      %s109 = sphi 0, %s95
      %s113 = sphi 0, %s113
      %s115 = sphi 0, %s113
      %s116 = sphi 0, %s115
      %s130 = sphi 0, %s116
      %s134 = sphi 0, %s134
      %s136 = sphi 0, %s134
      %s137 = sphi 0, %s136
      %s151 = sphi 0, %s137
      %s155 = sphi 0, %s155
      %s157 = sphi 0, %s155
      %s158 = sphi 0, %s157
      %s172 = sphi 0, %s158
      %s176 = sphi 0, %s176
      %s178 = sphi 0, %s176
      %s179 = sphi 0, %s178
      %s193 = sphi 0, %s179
      %s199 = sphi 0, %s201
      %s202 = sphi 0, %s199
      %s203 = sphi 0, %s202
      %s219 = sphi 0, %s203
    $region4: #{forward.1} parent=1 // loop_header_branch
      %19 = sbr.rel (%p17) target = $region8
    $region5: #{forward.1} parent=1 // loop_body
      %s21 = ssub.s32 %s16, 1
      %s22 = ssub.s32 %s16, 2
      %s23 = sadd.s32 %s16, 1
      %s24 = ssub.s32 %s16, %s23
      %p25 = scmp.eq.s32.totalorder %s24, 0
      %s27 = sadd.s32 %s26, 1
      %s28 = scalar_select %p25, %s26, %s27
      %p31 = pneg %p25
      %p32 = scmp.eq.s32.totalorder %s16, 1
      %p33 = por %p31, %p32
      %p34 = scmp.ne.s32.totalorder %s26, %s29
      %p35 = scmp.eq.s32.totalorder %s16, 0
      %p36 = por %p34, %p35
      %p37 = scmp.ne.s32.totalorder %s26, %s29
      %p38 = scmp.eq.s32.totalorder %s21, 1
      %p39 = por %p37, %p38
      %p40 = scmp.ne.s32.totalorder %s29, %s30
      %p41 = scmp.eq.s32.totalorder %s21, 0
      %p42 = por %p40, %p41
      %p43 = scmp.ne.s32.totalorder %s29, %s30
      %p44 = scmp.eq.s32.totalorder %s22, 1
      %p45 = por %p43, %p44
      %p47 = scmp.ne.s32.totalorder %s30, %s46
      %p48 = scmp.eq.s32.totalorder %s22, 0
      %p49 = por %p47, %p48
      %s51 = sadd.s32 %s50, 1
      %p54 = scmp.eq.s32.totalorder %s16, 1
      %p55 = scmp.ne.s32.totalorder %s50, %s52
      %p56 = scmp.eq.s32.totalorder %s16, 0
      %p57 = por %p55, %p56
      %p58 = scmp.ne.s32.totalorder %s50, %s52
      %p59 = scmp.eq.s32.totalorder %s21, 1
      %p60 = por %p58, %p59
      %p61 = scmp.ne.s32.totalorder %s52, %s53
      %p62 = scmp.eq.s32.totalorder %s21, 0
      %p63 = por %p61, %p62
      %p64 = scmp.ne.s32.totalorder %s52, %s53
      %p65 = scmp.eq.s32.totalorder %s22, 1
      %p66 = por %p64, %p65
      %p68 = scmp.ne.s32.totalorder %s53, %s67
      %p69 = scmp.eq.s32.totalorder %s22, 0
      %p70 = por %p68, %p69
      %s72 = sadd.s32 %s71, 1
      %p75 = scmp.eq.s32.totalorder %s16, 1
      %p76 = scmp.ne.s32.totalorder %s71, %s73
      %p77 = scmp.eq.s32.totalorder %s16, 0
      %p78 = por %p76, %p77
      %p79 = scmp.ne.s32.totalorder %s71, %s73
      %p80 = scmp.eq.s32.totalorder %s21, 1
      %p81 = por %p79, %p80
      %p82 = scmp.ne.s32.totalorder %s73, %s74
      %p83 = scmp.eq.s32.totalorder %s21, 0
      %p84 = por %p82, %p83
      %p85 = scmp.ne.s32.totalorder %s73, %s74
      %p86 = scmp.eq.s32.totalorder %s22, 1
      %p87 = por %p85, %p86
      %p89 = scmp.ne.s32.totalorder %s74, %s88
      %p90 = scmp.eq.s32.totalorder %s22, 0
      %p91 = por %p89, %p90
      %s93 = sadd.s32 %s92, 1
      %p96 = scmp.eq.s32.totalorder %s16, 1
      %p97 = scmp.ne.s32.totalorder %s92, %s94
      %p98 = scmp.eq.s32.totalorder %s16, 0
      %p99 = por %p97, %p98
      %p100 = scmp.ne.s32.totalorder %s92, %s94
      %p101 = scmp.eq.s32.totalorder %s21, 1
      %p102 = por %p100, %p101
      %p103 = scmp.ne.s32.totalorder %s94, %s95
      %p104 = scmp.eq.s32.totalorder %s21, 0
      %p105 = por %p103, %p104
      %p106 = scmp.ne.s32.totalorder %s94, %s95
      %p107 = scmp.eq.s32.totalorder %s22, 1
      %p108 = por %p106, %p107
      %p110 = scmp.ne.s32.totalorder %s95, %s109
      %p111 = scmp.eq.s32.totalorder %s22, 0
      %p112 = por %p110, %p111
      %s114 = sadd.s32 %s113, 1
      %p117 = scmp.eq.s32.totalorder %s16, 1
      %p118 = scmp.ne.s32.totalorder %s113, %s115
      %p119 = scmp.eq.s32.totalorder %s16, 0
      %p120 = por %p118, %p119
      %p121 = scmp.ne.s32.totalorder %s113, %s115
      %p122 = scmp.eq.s32.totalorder %s21, 1
      %p123 = por %p121, %p122
      %p124 = scmp.ne.s32.totalorder %s115, %s116
      %p125 = scmp.eq.s32.totalorder %s21, 0
      %p126 = por %p124, %p125
      %p127 = scmp.ne.s32.totalorder %s115, %s116
      %p128 = scmp.eq.s32.totalorder %s22, 1
      %p129 = por %p127, %p128
      %p131 = scmp.ne.s32.totalorder %s116, %s130
      %p132 = scmp.eq.s32.totalorder %s22, 0
      %p133 = por %p131, %p132
      %s135 = sadd.s32 %s134, 1
      %p138 = scmp.eq.s32.totalorder %s16, 1
      %p139 = scmp.ne.s32.totalorder %s134, %s136
      %p140 = scmp.eq.s32.totalorder %s16, 0
      %p141 = por %p139, %p140
      %p142 = scmp.ne.s32.totalorder %s134, %s136
      %p143 = scmp.eq.s32.totalorder %s21, 1
      %p144 = por %p142, %p143
      %p145 = scmp.ne.s32.totalorder %s136, %s137
      %p146 = scmp.eq.s32.totalorder %s21, 0
      %p147 = por %p145, %p146
      %p148 = scmp.ne.s32.totalorder %s136, %s137
      %p149 = scmp.eq.s32.totalorder %s22, 1
      %p150 = por %p148, %p149
      %p152 = scmp.ne.s32.totalorder %s137, %s151
      %p153 = scmp.eq.s32.totalorder %s22, 0
      %p154 = por %p152, %p153
      %s156 = sadd.s32 %s155, 1
      %p159 = scmp.eq.s32.totalorder %s16, 1
      %p160 = scmp.ne.s32.totalorder %s155, %s157
      %p161 = scmp.eq.s32.totalorder %s16, 0
      %p162 = por %p160, %p161
      %p163 = scmp.ne.s32.totalorder %s155, %s157
      %p164 = scmp.eq.s32.totalorder %s21, 1
      %p165 = por %p163, %p164
      %p166 = scmp.ne.s32.totalorder %s157, %s158
      %p167 = scmp.eq.s32.totalorder %s21, 0
      %p168 = por %p166, %p167
      %p169 = scmp.ne.s32.totalorder %s157, %s158
      %p170 = scmp.eq.s32.totalorder %s22, 1
      %p171 = por %p169, %p170
      %p173 = scmp.ne.s32.totalorder %s158, %s172
      %p174 = scmp.eq.s32.totalorder %s22, 0
      %p175 = por %p173, %p174
      %s177 = sadd.s32 %s176, 1
      %p180 = scmp.eq.s32.totalorder %s16, 1
      %p181 = scmp.ne.s32.totalorder %s176, %s178
      %p182 = scmp.eq.s32.totalorder %s16, 0
      %p183 = por %p181, %p182
      %p184 = scmp.ne.s32.totalorder %s176, %s178
      %p185 = scmp.eq.s32.totalorder %s21, 1
      %p186 = por %p184, %p185
      %p187 = scmp.ne.s32.totalorder %s178, %s179
      %p188 = scmp.eq.s32.totalorder %s21, 0
      %p189 = por %p187, %p188
      %p190 = scmp.ne.s32.totalorder %s178, %s179
      %p191 = scmp.eq.s32.totalorder %s22, 1
      %p192 = por %p190, %p191
      %p194 = scmp.ne.s32.totalorder %s179, %s193
      %p195 = scmp.eq.s32.totalorder %s22, 0
      %p196 = por %p194, %p195
      %s197 = ssub.s32 %s16, %s23
      %p198 = scmp.eq.s32.totalorder %s197, 0
      %s200 = sadd.s32 %s199, 1
      %s201 = scalar_select %p198, %s199, %s200
      %p204 = pneg %p198
      %p205 = scmp.eq.s32.totalorder %s16, 1
      %p206 = por %p204, %p205
      %p207 = scmp.ne.s32.totalorder %s199, %s202
      %p208 = scmp.eq.s32.totalorder %s16, 0
      %p209 = por %p207, %p208
      %p210 = scmp.ne.s32.totalorder %s199, %s202
      %p211 = scmp.eq.s32.totalorder %s21, 1
      %p212 = por %p210, %p211
      %p213 = scmp.ne.s32.totalorder %s202, %s203
      %p214 = scmp.eq.s32.totalorder %s21, 0
      %p215 = por %p213, %p214
      %p216 = scmp.ne.s32.totalorder %s202, %s203
      %p217 = scmp.eq.s32.totalorder %s22, 1
      %p218 = por %p216, %p217
      %p220 = scmp.ne.s32.totalorder %s203, %s219
      %p221 = scmp.eq.s32.totalorder %s22, 0
      %p222 = por %p220, %p221
      %p223 = scmp.le.s32.totalorder 1, %s16
      %p224 = scmp.lt.s32.totalorder %s16, 3
      %p225 = pnand %p223, %p224
      %p226 = pneg %p225
      // Predicated region
      $region9: #{forward.1} parent=5 // pred_check
        _
      $region10: #{forward.1} parent=5 // pred_check_branch
        %228 = sbr.rel (%p225) target = $region12
      $region11: #{forward.1} parent=5 // pred_region
        %s229 = ssub.s32 %s16, 1
        // Predicated region
        $region13: #{forward.1} parent=11 // pred_check
          %p230 = pneg %p63
        $region14: #{forward.1} parent=11 // pred_check_branch
          %232 = sbr.rel (%p230) target = $region16
        $region15: #{forward.1} parent=11 // pred_region
          _
        $region16: #{forward.1} parent=11 // pred_fallthru
          _
        // Predicated region
        $region17: #{forward.1} parent=11 // pred_check
          %p233 = pneg %p84
        $region18: #{forward.1} parent=11 // pred_check_branch
          %235 = sbr.rel (%p233) target = $region20
        $region19: #{forward.1} parent=11 // pred_region
          _
        $region20: #{forward.1} parent=11 // pred_fallthru
          _
        // Predicated region
        $region21: #{forward.1} parent=11 // pred_check
          %p236 = pneg %p105
        $region22: #{forward.1} parent=11 // pred_check_branch
          %238 = sbr.rel (%p236) target = $region24
        $region23: #{forward.1} parent=11 // pred_region
          %240 = vsyncadd [#allocation3], 0
          %s241 = sshll.u32 %s3, 4
          %s242 = int_to_ptr.hbm [resolvable:$true] %s241
          %s243 = sshll.u32 [#allocation2], 4
          %s244 = int_to_ptr.vmem [resolvable:$true] %s243
          %249 = dma.hbm_to_vmem [thread:$0]  %s242, 36864, %s244, [#allocation3], 128, 128, 8
        $region24: #{forward.1} parent=11 // pred_fallthru
          _
        // Predicated region
        $region25: #{forward.1} parent=11 // pred_check
          %p250 = pneg %p126
        $region26: #{forward.1} parent=11 // pred_check_branch
          %252 = sbr.rel (%p250) target = $region28
        $region27: #{forward.1} parent=11 // pred_region
          _
        $region28: #{forward.1} parent=11 // pred_fallthru
          _
        // Predicated region
        $region29: #{forward.1} parent=11 // pred_check
          %p253 = pneg %p147
        $region30: #{forward.1} parent=11 // pred_check_branch
          %255 = sbr.rel (%p253) target = $region32
        $region31: #{forward.1} parent=11 // pred_region
          _
        $region32: #{forward.1} parent=11 // pred_fallthru
          _
        // Predicated region
        $region33: #{forward.1} parent=11 // pred_check
          %p256 = pneg %p168
        $region34: #{forward.1} parent=11 // pred_check_branch
          %258 = sbr.rel (%p256) target = $region36
        $region35: #{forward.1} parent=11 // pred_region
          %260 = vsyncadd [#allocation5], 0
          %s261 = sshll.u32 %s6, 4
          %s262 = int_to_ptr.hbm [resolvable:$true] %s261
          %s263 = sshll.u32 [#allocation4], 4
          %s264 = int_to_ptr.vmem [resolvable:$true] %s263
          %269 = dma.hbm_to_vmem [thread:$0]  %s262, 8064, %s264, [#allocation5], 128, 128, 8
        $region36: #{forward.1} parent=11 // pred_fallthru
          _
        // Predicated region
        $region37: #{forward.1} parent=11 // pred_check
          %p270 = pneg %p189
        $region38: #{forward.1} parent=11 // pred_check_branch
          %272 = sbr.rel (%p270) target = $region40
        $region39: #{forward.1} parent=11 // pred_region
          %274 = vsyncadd [#allocation5], 0
          %s276 = sshll.u32 %s7, 4
          %s277 = int_to_ptr.hbm [resolvable:$true] %s276
          %s278 = sshll.u32 [#allocation6], 4
          %s279 = int_to_ptr.vmem [resolvable:$true] %s278
          %281 = dma.hbm_to_vmem [thread:$0]  %s277, 32, %s279, [#allocation5]
        $region40: #{forward.1} parent=11 // pred_fallthru
          _
      $region12: #{forward.1} parent=5 // pred_fallthru
        _
      %p282 = scmp.lt.s32.totalorder %s16, 2
      // Predicated region
      $region41: #{forward.1} parent=5 // pred_check
        %p283 = pneg %p282
      $region42: #{forward.1} parent=5 // pred_check_branch
        %285 = sbr.rel (%p283) target = $region44
      $region43: #{forward.1} parent=5 // pred_region
        // Predicated region
        $region45: #{forward.1} parent=43 // pred_check
          %p286 = pneg %p36
        $region46: #{forward.1} parent=43 // pred_check_branch
          %288 = sbr.rel (%p286) target = $region48
        $region47: #{forward.1} parent=43 // pred_region
          %p289 = scmp.lt.s32.totalorder %s16, 1
          %s290 = scalar_select %p289, %s16, 1
          %s291 = smul.addr %s290, 2
          %s292 = smul.addr %s291, 4
          %s293 = scalar_lea.vmem %s0, %s292
        $region48: #{forward.1} parent=43 // pred_fallthru
          _
      $region44: #{forward.1} parent=5 // pred_fallthru
        _
      %p294 = scmp.le.s32.totalorder 1, %s16
      %p295 = scmp.lt.s32.totalorder %s16, 3
      %p296 = pnand %p294, %p295
      %p297 = pneg %p296
      // Predicated region
      $region49: #{forward.1} parent=5 // pred_check
        _
      $region50: #{forward.1} parent=5 // pred_check_branch
        %299 = sbr.rel (%p296) target = $region52
      $region51: #{forward.1} parent=5 // pred_region
        %s300 = ssub.s32 %s16, 1
        // Predicated region
        $region53: #{forward.1} parent=51 // pred_check
          %p301 = pneg %p105
        $region54: #{forward.1} parent=51 // pred_check_branch
          %303 = sbr.rel (%p301) target = $region56
        $region55: #{forward.1} parent=51 // pred_region
          %305 = dma.done [#allocation3], 36864
        $region56: #{forward.1} parent=51 // pred_fallthru
          _
        // Predicated region
        $region57: #{forward.1} parent=51 // pred_check
          %p306 = pneg %p168
        $region58: #{forward.1} parent=51 // pred_check_branch
          %308 = sbr.rel (%p306) target = $region60
        $region59: #{forward.1} parent=51 // pred_region
          %310 = dma.done [#allocation5], 8064
        $region60: #{forward.1} parent=51 // pred_fallthru
          _
        // Predicated region
        $region61: #{forward.1} parent=51 // pred_check
          %p311 = pneg %p189
        $region62: #{forward.1} parent=51 // pred_check_branch
          %313 = sbr.rel (%p311) target = $region64
        $region63: #{forward.1} parent=51 // pred_region
          %315 = dma.done [#allocation5], 32
        $region64: #{forward.1} parent=51 // pred_fallthru
          _
        %p316 = scmp.lt.s32.totalorder %s21, 1
        %s317 = scalar_select %p316, %s21, 1
        %s318 = smul.addr %s317, 2
        %s319 = smul.addr %s318, 4
        %s320 = scalar_lea.vmem %s0, %s319
        %p321 = pneg %p42
        %p322 = pneg %p39
        %p323 = pneg %p63
        %p324 = pneg %p60
        %p325 = pneg %p84
        %p326 = pneg %p81
        %p327 = pneg %p105
        %p328 = pneg %p102
        %p329 = pneg %p126
        %p330 = pneg %p123
        %p331 = pneg %p147
        %p332 = pneg %p144
        %p333 = pneg %p168
        %p334 = pneg %p165
        %p335 = pneg %p189
        %p336 = pneg %p186
        %p337 = pneg %p215
        %p338 = pneg %p212
        %p339 = scmp.lt.s32.totalorder %s21, 1
        %s340 = scalar_select %p339, %s21, 1
        %s341 = smul.addr %s340, 2
        %s342 = smul.addr %s341, 8
        %s343 = scalar_lea.vmem %s8, %s342
        %p344 = scmp.lt.s32.totalorder %s21, 1
        %s345 = scalar_select %p344, %s21, 1
        %s346 = smul.addr %s345, 2
        %s347 = smul.addr %s346, 4
        %s348 = scalar_lea.vmem %s0, %s347
        %p349 = scmp.lt.s32.totalorder %s21, 1
        %s350 = scalar_select %p349, %s21, 1
        %s351 = smul.addr %s350, 2
        %s352 = smul.addr %s351, 8
        %s353 = scalar_lea.vmem %s8, %s352
        %v354 = vld [vmem:[%s348] sm:$0xff]
        %v355 = vld [vmem:[#allocation2] sm:$0xff]
        %v356 = vld [vmem:[#allocation2 + $0x8] sm:$0xff]
        %v357 = vld [vmem:[#allocation2 + $0x10] sm:$0xff]
        %v358 = vld [vmem:[#allocation2 + $0x18] sm:$0xff]
        %v359 = vld [vmem:[#allocation2 + $0x20] sm:$0xff]
        %v360 = vld [vmem:[#allocation2 + $0x28] sm:$0xff]
        %v361 = vld [vmem:[#allocation2 + $0x30] sm:$0xff]
        %v362 = vld [vmem:[#allocation2 + $0x38] sm:$0xff]
        %v363 = vld [vmem:[#allocation2 + $0x40] sm:$0xff]
        %v364 = vld [vmem:[#allocation2 + $0x48] sm:$0xff]
        %v365 = vld [vmem:[#allocation2 + $0x50] sm:$0xff]
        %v366 = vld [vmem:[#allocation2 + $0x58] sm:$0xff]
        %v367 = vld [vmem:[#allocation2 + $0x60] sm:$0xff]
        %v368 = vld [vmem:[#allocation2 + $0x68] sm:$0xff]
        %v369 = vld [vmem:[#allocation2 + $0x70] sm:$0xff]
        %v370 = vld [vmem:[#allocation2 + $0x78] sm:$0xff]
        %v371 = vld [vmem:[#allocation2 + $0x80] sm:$0xff]
        %v372 = vld [vmem:[#allocation2 + $0x88] sm:$0xff]
        %v373 = vld [vmem:[#allocation2 + $0x90] sm:$0xff]
        %v374 = vld [vmem:[#allocation2 + $0x98] sm:$0xff]
        %v375 = vld [vmem:[#allocation2 + $0xa0] sm:$0xff]
        %v376 = vld [vmem:[#allocation2 + $0xa8] sm:$0xff]
        %v377 = vld [vmem:[#allocation2 + $0xb0] sm:$0xff]
        %v378 = vld [vmem:[#allocation2 + $0xb8] sm:$0xff]
        %v379 = vld [vmem:[#allocation2 + $0xc0] sm:$0xff]
        %v380 = vld [vmem:[#allocation2 + $0xc8] sm:$0xff]
        %v381 = vld [vmem:[#allocation2 + $0xd0] sm:$0xff]
        %v382 = vld [vmem:[#allocation2 + $0xd8] sm:$0xff]
        %v383 = vld [vmem:[#allocation2 + $0xe0] sm:$0xff]
        %v384 = vld [vmem:[#allocation2 + $0xe8] sm:$0xff]
        %v385 = vld [vmem:[#allocation2 + $0xf0] sm:$0xff]
        %v386 = vld [vmem:[#allocation2 + $0xf8] sm:$0xff]
        %388 = vst [vmem:[#allocation1] ss:$2 sm:$0xff] %v354
        %v389 = vld.sshfl [vmem:[#allocation1] sm:$0xff pattern:$0x75316420]
        %v390 = vld.sshfl [vmem:[#allocation1 + $0x8] sm:$0xff pattern:$0x75316420]
        %393 = vmatpush.msra.mxu0 %v370
        %394 = vmatpush.msra.mxu0 %v369
        %395 = vmatpush.msra.mxu0 %v368
        %396 = vmatpush.msra.mxu0 %v367
        %397 = vmatpush.msra.mxu0 %v366
        %398 = vmatpush.msra.mxu0 %v365
        %399 = vmatpush.msra.mxu0 %v364
        %400 = vmatpush.msra.mxu0 %v363
        %401 = vmatpush.msra.mxu0 %v362
        %402 = vmatpush.msra.mxu0 %v361
        %403 = vmatpush.msra.mxu0 %v360
        %404 = vmatpush.msra.mxu0 %v359
        %405 = vmatpush.msra.mxu0 %v358
        %406 = vmatpush.msra.mxu0 %v357
        %407 = vmatpush.msra.mxu0 %v356
        %408 = vmatpush.msra.mxu0 %v355
        %409 = vmatmul.f32.gmra.mxu0 %v389
        %v410 = vpop.f32.mrf.mxu0
        %v411 = vadd.f32 0.0, %v410
        %412 = vdwg.mxu0
        %413 = vmatpush.msra.mxu0 %v386
        %414 = vmatpush.msra.mxu0 %v385
        %415 = vmatpush.msra.mxu0 %v384
        %416 = vmatpush.msra.mxu0 %v383
        %417 = vmatpush.msra.mxu0 %v382
        %418 = vmatpush.msra.mxu0 %v381
        %419 = vmatpush.msra.mxu0 %v380
        %420 = vmatpush.msra.mxu0 %v379
        %421 = vmatpush.msra.mxu0 %v378
        %422 = vmatpush.msra.mxu0 %v377
        %423 = vmatpush.msra.mxu0 %v376
        %424 = vmatpush.msra.mxu0 %v375
        %425 = vmatpush.msra.mxu0 %v374
        %426 = vmatpush.msra.mxu0 %v373
        %427 = vmatpush.msra.mxu0 %v372
        %428 = vmatpush.msra.mxu0 %v371
        %429 = vmatmul.f32.gmra.mxu0 %v390
        %v430 = vpop.f32.mrf.mxu0
        %v431 = vadd.f32 %v411, %v430
        %432 = vdwg.mxu0
        %v433 = vld [vmem:[%s1] sm:$0xff]
        %s434 = scalar_lea.vmem [#allocation2], 256
        %v435 = vld [vmem:[%s434] sm:$0xff]
        %v436 = vld [vmem:[%s434 + $0x8] sm:$0xff]
        %v437 = vld [vmem:[%s434 + $0x10] sm:$0xff]
        %v438 = vld [vmem:[%s434 + $0x18] sm:$0xff]
        %v439 = vld [vmem:[%s434 + $0x20] sm:$0xff]
        %v440 = vld [vmem:[%s434 + $0x28] sm:$0xff]
        %v441 = vld [vmem:[%s434 + $0x30] sm:$0xff]
        %v442 = vld [vmem:[%s434 + $0x38] sm:$0xff]
        %v443 = vld [vmem:[%s434 + $0x40] sm:$0xff]
        %v444 = vld [vmem:[%s434 + $0x48] sm:$0xff]
        %v445 = vld [vmem:[%s434 + $0x50] sm:$0xff]
        %v446 = vld [vmem:[%s434 + $0x58] sm:$0xff]
        %v447 = vld [vmem:[%s434 + $0x60] sm:$0xff]
        %v448 = vld [vmem:[%s434 + $0x68] sm:$0xff]
        %v449 = vld [vmem:[%s434 + $0x70] sm:$0xff]
        %v450 = vld [vmem:[%s434 + $0x78] sm:$0xff]
        %v451 = vld [vmem:[%s434 + $0x80] sm:$0xff]
        %v452 = vld [vmem:[%s434 + $0x88] sm:$0xff]
        %v453 = vld [vmem:[%s434 + $0x90] sm:$0xff]
        %v454 = vld [vmem:[%s434 + $0x98] sm:$0xff]
        %v455 = vld [vmem:[%s434 + $0xa0] sm:$0xff]
        %v456 = vld [vmem:[%s434 + $0xa8] sm:$0xff]
        %v457 = vld [vmem:[%s434 + $0xb0] sm:$0xff]
        %v458 = vld [vmem:[%s434 + $0xb8] sm:$0xff]
        %v459 = vld [vmem:[%s434 + $0xc0] sm:$0xff]
        %v460 = vld [vmem:[%s434 + $0xc8] sm:$0xff]
        %v461 = vld [vmem:[%s434 + $0xd0] sm:$0xff]
        %v462 = vld [vmem:[%s434 + $0xd8] sm:$0xff]
        %v463 = vld [vmem:[%s434 + $0xe0] sm:$0xff]
        %v464 = vld [vmem:[%s434 + $0xe8] sm:$0xff]
        %v465 = vld [vmem:[%s434 + $0xf0] sm:$0xff]
        %v466 = vld [vmem:[%s434 + $0xf8] sm:$0xff]
        %467 = vst [vmem:[#allocation1] ss:$2 sm:$0xff] %v354
        %v468 = vld.sshfl [vmem:[#allocation1] sm:$0xff pattern:$0x75316420]
        %v469 = vld.sshfl [vmem:[#allocation1 + $0x8] sm:$0xff pattern:$0x75316420]
        %472 = vmatpush.msra.mxu0 %v450
        %473 = vmatpush.msra.mxu0 %v449
        %474 = vmatpush.msra.mxu0 %v448
        %475 = vmatpush.msra.mxu0 %v447
        %476 = vmatpush.msra.mxu0 %v446
        %477 = vmatpush.msra.mxu0 %v445
        %478 = vmatpush.msra.mxu0 %v444
        %479 = vmatpush.msra.mxu0 %v443
        %480 = vmatpush.msra.mxu0 %v442
        %481 = vmatpush.msra.mxu0 %v441
        %482 = vmatpush.msra.mxu0 %v440
        %483 = vmatpush.msra.mxu0 %v439
        %484 = vmatpush.msra.mxu0 %v438
        %485 = vmatpush.msra.mxu0 %v437
        %486 = vmatpush.msra.mxu0 %v436
        %487 = vmatpush.msra.mxu0 %v435
        %488 = vmatmul.f32.gmra.mxu0 %v468
        %v489 = vpop.f32.mrf.mxu0
        %v490 = vadd.f32 0.0, %v489
        %491 = vdwg.mxu0
        %492 = vmatpush.msra.mxu0 %v466
        %493 = vmatpush.msra.mxu0 %v465
        %494 = vmatpush.msra.mxu0 %v464
        %495 = vmatpush.msra.mxu0 %v463
        %496 = vmatpush.msra.mxu0 %v462
        %497 = vmatpush.msra.mxu0 %v461
        %498 = vmatpush.msra.mxu0 %v460
        %499 = vmatpush.msra.mxu0 %v459
        %500 = vmatpush.msra.mxu0 %v458
        %501 = vmatpush.msra.mxu0 %v457
        %502 = vmatpush.msra.mxu0 %v456
        %503 = vmatpush.msra.mxu0 %v455
        %504 = vmatpush.msra.mxu0 %v454
        %505 = vmatpush.msra.mxu0 %v453
        %506 = vmatpush.msra.mxu0 %v452
        %507 = vmatpush.msra.mxu0 %v451
        %508 = vmatmul.f32.gmra.mxu0 %v469
        %v509 = vpop.f32.mrf.mxu0
        %v510 = vadd.f32 %v490, %v509
        %511 = vdwg.mxu0
        %s512 = scalar_lea.vmem %s1, 8
        %v513 = vld [vmem:[%s512] sm:$0xff]
        %vm514 = vcmask 31744
        %v516 = vsel %vm514, %v513, 0
        %vm518 = vcmask 1043456
        %v520 = vsel %vm518, %v510, 0
        %522 = vmatpush.msra.mxu0 0.0
        %523 = vmatpush.msra.mxu0 0.0
        %524 = vmatpush.msra.mxu0 0.0
        %525 = vmatpush.msra.mxu0 0.0
        %526 = vmatpush.msra.mxu0 0.0
        %527 = vmatpush.msra.mxu0 0.0
        %528 = vmatpush.msra.mxu0 0.0
        %529 = vmatpush.msra.mxu0 0.0
        %530 = vmatpush.msra.mxu0 0.0
        %531 = vmatpush.msra.mxu0 0.0
        %532 = vmatpush.msra.mxu0 0.0
        %533 = vmatpush.msra.mxu0 0.0
        %534 = vmatpush.msra.mxu0 0.0
        %535 = vmatpush.msra.mxu0 0.0
        %536 = vmatpush.msra.mxu0 0.0
        %537 = vmatpush.msra.mxu0 %v520
        %538 = vmatmul.f32.gmra.mxu0 %v516
        %v539 = vpop.f32.mrf.mxu0
        %v540 = vadd.f32 0.0, %v539
        %541 = vdwg.mxu0
        %v543 = vsel %vm514, %v433, 0
        %v546 = vsel %vm518, %v431, 0
        %548 = vmatpush.msra.mxu0 0.0
        %549 = vmatpush.msra.mxu0 0.0
        %550 = vmatpush.msra.mxu0 0.0
        %551 = vmatpush.msra.mxu0 0.0
        %552 = vmatpush.msra.mxu0 0.0
        %553 = vmatpush.msra.mxu0 0.0
        %554 = vmatpush.msra.mxu0 0.0
        %555 = vmatpush.msra.mxu0 0.0
        %556 = vmatpush.msra.mxu0 0.0
        %557 = vmatpush.msra.mxu0 0.0
        %558 = vmatpush.msra.mxu0 0.0
        %559 = vmatpush.msra.mxu0 0.0
        %560 = vmatpush.msra.mxu0 0.0
        %561 = vmatpush.msra.mxu0 0.0
        %562 = vmatpush.msra.mxu0 0.0
        %563 = vmatpush.msra.mxu0 %v546
        %564 = vmatmul.f32.gmra.mxu0 %v543
        %v565 = vpop.f32.mrf.mxu0
        %v566 = vadd.f32 %v540, %v565
        %567 = vdwg.mxu0
        %s568 = scalar_lea.vmem [#allocation2], 512
        %v569 = vld [vmem:[%s568] sm:$0xff]
        %v570 = vld [vmem:[%s568 + $0x8] sm:$0xff]
        %v571 = vld [vmem:[%s568 + $0x10] sm:$0xff]
        %v572 = vld [vmem:[%s568 + $0x18] sm:$0xff]
        %v573 = vld [vmem:[%s568 + $0x20] sm:$0xff]
        %v574 = vld [vmem:[%s568 + $0x28] sm:$0xff]
        %v575 = vld [vmem:[%s568 + $0x30] sm:$0xff]
        %v576 = vld [vmem:[%s568 + $0x38] sm:$0xff]
        %v577 = vld [vmem:[%s568 + $0x40] sm:$0xff]
        %v578 = vld [vmem:[%s568 + $0x48] sm:$0xff]
        %v579 = vld [vmem:[%s568 + $0x50] sm:$0xff]
        %v580 = vld [vmem:[%s568 + $0x58] sm:$0xff]
        %v581 = vld [vmem:[%s568 + $0x60] sm:$0xff]
        %v582 = vld [vmem:[%s568 + $0x68] sm:$0xff]
        %v583 = vld [vmem:[%s568 + $0x70] sm:$0xff]
        %v584 = vld [vmem:[%s568 + $0x78] sm:$0xff]
        %v585 = vld [vmem:[%s568 + $0x80] sm:$0xff]
        %v586 = vld [vmem:[%s568 + $0x88] sm:$0xff]
        %v587 = vld [vmem:[%s568 + $0x90] sm:$0xff]
        %v588 = vld [vmem:[%s568 + $0x98] sm:$0xff]
        %v589 = vld [vmem:[%s568 + $0xa0] sm:$0xff]
        %v590 = vld [vmem:[%s568 + $0xa8] sm:$0xff]
        %v591 = vld [vmem:[%s568 + $0xb0] sm:$0xff]
        %v592 = vld [vmem:[%s568 + $0xb8] sm:$0xff]
        %v593 = vld [vmem:[%s568 + $0xc0] sm:$0xff]
        %v594 = vld [vmem:[%s568 + $0xc8] sm:$0xff]
        %v595 = vld [vmem:[%s568 + $0xd0] sm:$0xff]
        %v596 = vld [vmem:[%s568 + $0xd8] sm:$0xff]
        %v597 = vld [vmem:[%s568 + $0xe0] sm:$0xff]
        %v598 = vld [vmem:[%s568 + $0xe8] sm:$0xff]
        %v599 = vld [vmem:[%s568 + $0xf0] sm:$0xff]
        %v600 = vld [vmem:[%s568 + $0xf8] sm:$0xff]
        %601 = vst [vmem:[#allocation1] ss:$2 sm:$0xff] %v354
        %v602 = vld.sshfl [vmem:[#allocation1] sm:$0xff pattern:$0x75316420]
        %v603 = vld.sshfl [vmem:[#allocation1 + $0x8] sm:$0xff pattern:$0x75316420]
        %606 = vmatpush.msra.mxu0 %v584
        %607 = vmatpush.msra.mxu0 %v583
        %608 = vmatpush.msra.mxu0 %v582
        %609 = vmatpush.msra.mxu0 %v581
        %610 = vmatpush.msra.mxu0 %v580
        %611 = vmatpush.msra.mxu0 %v579
        %612 = vmatpush.msra.mxu0 %v578
        %613 = vmatpush.msra.mxu0 %v577
        %614 = vmatpush.msra.mxu0 %v576
        %615 = vmatpush.msra.mxu0 %v575
        %616 = vmatpush.msra.mxu0 %v574
        %617 = vmatpush.msra.mxu0 %v573
        %618 = vmatpush.msra.mxu0 %v572
        %619 = vmatpush.msra.mxu0 %v571
        %620 = vmatpush.msra.mxu0 %v570
        %621 = vmatpush.msra.mxu0 %v569
        %622 = vmatmul.f32.gmra.mxu0 %v602
        %v623 = vpop.f32.mrf.mxu0
        %v624 = vadd.f32 0.0, %v623
        %625 = vdwg.mxu0
        %626 = vmatpush.msra.mxu0 %v600
        %627 = vmatpush.msra.mxu0 %v599
        %628 = vmatpush.msra.mxu0 %v598
        %629 = vmatpush.msra.mxu0 %v597
        %630 = vmatpush.msra.mxu0 %v596
        %631 = vmatpush.msra.mxu0 %v595
        %632 = vmatpush.msra.mxu0 %v594
        %633 = vmatpush.msra.mxu0 %v593
        %634 = vmatpush.msra.mxu0 %v592
        %635 = vmatpush.msra.mxu0 %v591
        %636 = vmatpush.msra.mxu0 %v590
        %637 = vmatpush.msra.mxu0 %v589
        %638 = vmatpush.msra.mxu0 %v588
        %639 = vmatpush.msra.mxu0 %v587
        %640 = vmatpush.msra.mxu0 %v586
        %641 = vmatpush.msra.mxu0 %v585
        %642 = vmatmul.f32.gmra.mxu0 %v603
        %v643 = vpop.f32.mrf.mxu0
        %v644 = vadd.f32 %v624, %v643
        %645 = vdwg.mxu0
        %s646 = scalar_lea.vmem %s1, 16
        %v647 = vld [vmem:[%s646] sm:$0xff]
        %v649 = vsel %vm514, %v647, 0
        %v652 = vsel %vm518, %v644, 0
        %654 = vmatpush.msra.mxu0 0.0
        %655 = vmatpush.msra.mxu0 0.0
        %656 = vmatpush.msra.mxu0 0.0
        %657 = vmatpush.msra.mxu0 0.0
        %658 = vmatpush.msra.mxu0 0.0
        %659 = vmatpush.msra.mxu0 0.0
        %660 = vmatpush.msra.mxu0 0.0
        %661 = vmatpush.msra.mxu0 0.0
        %662 = vmatpush.msra.mxu0 0.0
        %663 = vmatpush.msra.mxu0 0.0
        %664 = vmatpush.msra.mxu0 0.0
        %665 = vmatpush.msra.mxu0 0.0
        %666 = vmatpush.msra.mxu0 0.0
        %667 = vmatpush.msra.mxu0 0.0
        %668 = vmatpush.msra.mxu0 0.0
        %669 = vmatpush.msra.mxu0 %v652
        %670 = vmatmul.f32.gmra.mxu0 %v649
        %v671 = vpop.f32.mrf.mxu0
        %v672 = vadd.f32 0.0, %v671
        %673 = vdwg.mxu0
        %v674 = vadd.f32 %v566, %v672
        %s675 = scalar_lea.vmem [#allocation2], 768
        %v676 = vld [vmem:[%s675] sm:$0xff]
        %v677 = vld [vmem:[%s675 + $0x8] sm:$0xff]
        %v678 = vld [vmem:[%s675 + $0x10] sm:$0xff]
        %v679 = vld [vmem:[%s675 + $0x18] sm:$0xff]
        %v680 = vld [vmem:[%s675 + $0x20] sm:$0xff]
        %v681 = vld [vmem:[%s675 + $0x28] sm:$0xff]
        %v682 = vld [vmem:[%s675 + $0x30] sm:$0xff]
        %v683 = vld [vmem:[%s675 + $0x38] sm:$0xff]
        %v684 = vld [vmem:[%s675 + $0x40] sm:$0xff]
        %v685 = vld [vmem:[%s675 + $0x48] sm:$0xff]
        %v686 = vld [vmem:[%s675 + $0x50] sm:$0xff]
        %v687 = vld [vmem:[%s675 + $0x58] sm:$0xff]
        %v688 = vld [vmem:[%s675 + $0x60] sm:$0xff]
        %v689 = vld [vmem:[%s675 + $0x68] sm:$0xff]
        %v690 = vld [vmem:[%s675 + $0x70] sm:$0xff]
        %v691 = vld [vmem:[%s675 + $0x78] sm:$0xff]
        %v692 = vld [vmem:[%s675 + $0x80] sm:$0xff]
        %v693 = vld [vmem:[%s675 + $0x88] sm:$0xff]
        %v694 = vld [vmem:[%s675 + $0x90] sm:$0xff]
        %v695 = vld [vmem:[%s675 + $0x98] sm:$0xff]
        %v696 = vld [vmem:[%s675 + $0xa0] sm:$0xff]
        %v697 = vld [vmem:[%s675 + $0xa8] sm:$0xff]
        %v698 = vld [vmem:[%s675 + $0xb0] sm:$0xff]
        %v699 = vld [vmem:[%s675 + $0xb8] sm:$0xff]
        %v700 = vld [vmem:[%s675 + $0xc0] sm:$0xff]
        %v701 = vld [vmem:[%s675 + $0xc8] sm:$0xff]
        %v702 = vld [vmem:[%s675 + $0xd0] sm:$0xff]
        %v703 = vld [vmem:[%s675 + $0xd8] sm:$0xff]
        %v704 = vld [vmem:[%s675 + $0xe0] sm:$0xff]
        %v705 = vld [vmem:[%s675 + $0xe8] sm:$0xff]
        %v706 = vld [vmem:[%s675 + $0xf0] sm:$0xff]
        %v707 = vld [vmem:[%s675 + $0xf8] sm:$0xff]
        %708 = vst [vmem:[#allocation1] ss:$2 sm:$0xff] %v354
        %v709 = vld.sshfl [vmem:[#allocation1] sm:$0xff pattern:$0x75316420]
        %v710 = vld.sshfl [vmem:[#allocation1 + $0x8] sm:$0xff pattern:$0x75316420]
        %713 = vmatpush.msra.mxu0 %v691
        %714 = vmatpush.msra.mxu0 %v690
        %715 = vmatpush.msra.mxu0 %v689
        %716 = vmatpush.msra.mxu0 %v688
        %717 = vmatpush.msra.mxu0 %v687
        %718 = vmatpush.msra.mxu0 %v686
        %719 = vmatpush.msra.mxu0 %v685
        %720 = vmatpush.msra.mxu0 %v684
        %721 = vmatpush.msra.mxu0 %v683
        %722 = vmatpush.msra.mxu0 %v682
        %723 = vmatpush.msra.mxu0 %v681
        %724 = vmatpush.msra.mxu0 %v680
        %725 = vmatpush.msra.mxu0 %v679
        %726 = vmatpush.msra.mxu0 %v678
        %727 = vmatpush.msra.mxu0 %v677
        %728 = vmatpush.msra.mxu0 %v676
        %729 = vmatmul.f32.gmra.mxu0 %v709
        %v730 = vpop.f32.mrf.mxu0
        %v731 = vadd.f32 0.0, %v730
        %732 = vdwg.mxu0
        %733 = vmatpush.msra.mxu0 %v707
        %734 = vmatpush.msra.mxu0 %v706
        %735 = vmatpush.msra.mxu0 %v705
        %736 = vmatpush.msra.mxu0 %v704
        %737 = vmatpush.msra.mxu0 %v703
        %738 = vmatpush.msra.mxu0 %v702
        %739 = vmatpush.msra.mxu0 %v701
        %740 = vmatpush.msra.mxu0 %v700
        %741 = vmatpush.msra.mxu0 %v699
        %742 = vmatpush.msra.mxu0 %v698
        %743 = vmatpush.msra.mxu0 %v697
        %744 = vmatpush.msra.mxu0 %v696
        %745 = vmatpush.msra.mxu0 %v695
        %746 = vmatpush.msra.mxu0 %v694
        %747 = vmatpush.msra.mxu0 %v693
        %748 = vmatpush.msra.mxu0 %v692
        %749 = vmatmul.f32.gmra.mxu0 %v710
        %v750 = vpop.f32.mrf.mxu0
        %v751 = vadd.f32 %v731, %v750
        %752 = vdwg.mxu0
        %s753 = scalar_lea.vmem %s1, 24
        %v754 = vld [vmem:[%s753] sm:$0xff]
        %v756 = vsel %vm514, %v754, 0
        %v759 = vsel %vm518, %v751, 0
        %761 = vmatpush.msra.mxu0 0.0
        %762 = vmatpush.msra.mxu0 0.0
        %763 = vmatpush.msra.mxu0 0.0
        %764 = vmatpush.msra.mxu0 0.0
        %765 = vmatpush.msra.mxu0 0.0
        %766 = vmatpush.msra.mxu0 0.0
        %767 = vmatpush.msra.mxu0 0.0
        %768 = vmatpush.msra.mxu0 0.0
        %769 = vmatpush.msra.mxu0 0.0
        %770 = vmatpush.msra.mxu0 0.0
        %771 = vmatpush.msra.mxu0 0.0
        %772 = vmatpush.msra.mxu0 0.0
        %773 = vmatpush.msra.mxu0 0.0
        %774 = vmatpush.msra.mxu0 0.0
        %775 = vmatpush.msra.mxu0 0.0
        %776 = vmatpush.msra.mxu0 %v759
        %777 = vmatmul.f32.gmra.mxu0 %v756
        %v778 = vpop.f32.mrf.mxu0
        %v779 = vadd.f32 0.0, %v778
        %780 = vdwg.mxu0
        %v781 = vadd.f32 %v674, %v779
        %s782 = scalar_lea.vmem [#allocation2], 1024
        %v783 = vld [vmem:[%s782] sm:$0xff]
        %v784 = vld [vmem:[%s782 + $0x8] sm:$0xff]
        %v785 = vld [vmem:[%s782 + $0x10] sm:$0xff]
        %v786 = vld [vmem:[%s782 + $0x18] sm:$0xff]
        %v787 = vld [vmem:[%s782 + $0x20] sm:$0xff]
        %v788 = vld [vmem:[%s782 + $0x28] sm:$0xff]
        %v789 = vld [vmem:[%s782 + $0x30] sm:$0xff]
        %v790 = vld [vmem:[%s782 + $0x38] sm:$0xff]
        %v791 = vld [vmem:[%s782 + $0x40] sm:$0xff]
        %v792 = vld [vmem:[%s782 + $0x48] sm:$0xff]
        %v793 = vld [vmem:[%s782 + $0x50] sm:$0xff]
        %v794 = vld [vmem:[%s782 + $0x58] sm:$0xff]
        %v795 = vld [vmem:[%s782 + $0x60] sm:$0xff]
        %v796 = vld [vmem:[%s782 + $0x68] sm:$0xff]
        %v797 = vld [vmem:[%s782 + $0x70] sm:$0xff]
        %v798 = vld [vmem:[%s782 + $0x78] sm:$0xff]
        %v799 = vld [vmem:[%s782 + $0x80] sm:$0xff]
        %v800 = vld [vmem:[%s782 + $0x88] sm:$0xff]
        %v801 = vld [vmem:[%s782 + $0x90] sm:$0xff]
        %v802 = vld [vmem:[%s782 + $0x98] sm:$0xff]
        %v803 = vld [vmem:[%s782 + $0xa0] sm:$0xff]
        %v804 = vld [vmem:[%s782 + $0xa8] sm:$0xff]
        %v805 = vld [vmem:[%s782 + $0xb0] sm:$0xff]
        %v806 = vld [vmem:[%s782 + $0xb8] sm:$0xff]
        %v807 = vld [vmem:[%s782 + $0xc0] sm:$0xff]
        %v808 = vld [vmem:[%s782 + $0xc8] sm:$0xff]
        %v809 = vld [vmem:[%s782 + $0xd0] sm:$0xff]
        %v810 = vld [vmem:[%s782 + $0xd8] sm:$0xff]
        %v811 = vld [vmem:[%s782 + $0xe0] sm:$0xff]
        %v812 = vld [vmem:[%s782 + $0xe8] sm:$0xff]
        %v813 = vld [vmem:[%s782 + $0xf0] sm:$0xff]
        %v814 = vld [vmem:[%s782 + $0xf8] sm:$0xff]
        %815 = vst [vmem:[#allocation1] ss:$2 sm:$0xff] %v354
        %v816 = vld.sshfl [vmem:[#allocation1] sm:$0xff pattern:$0x75316420]
        %v817 = vld.sshfl [vmem:[#allocation1 + $0x8] sm:$0xff pattern:$0x75316420]
        %820 = vmatpush.msra.mxu0 %v798
        %821 = vmatpush.msra.mxu0 %v797
        %822 = vmatpush.msra.mxu0 %v796
        %823 = vmatpush.msra.mxu0 %v795
        %824 = vmatpush.msra.mxu0 %v794
        %825 = vmatpush.msra.mxu0 %v793
        %826 = vmatpush.msra.mxu0 %v792
        %827 = vmatpush.msra.mxu0 %v791
        %828 = vmatpush.msra.mxu0 %v790
        %829 = vmatpush.msra.mxu0 %v789
        %830 = vmatpush.msra.mxu0 %v788
        %831 = vmatpush.msra.mxu0 %v787
        %832 = vmatpush.msra.mxu0 %v786
        %833 = vmatpush.msra.mxu0 %v785
        %834 = vmatpush.msra.mxu0 %v784
        %835 = vmatpush.msra.mxu0 %v783
        %836 = vmatmul.f32.gmra.mxu0 %v816
        %v837 = vpop.f32.mrf.mxu0
        %v838 = vadd.f32 0.0, %v837
        %839 = vdwg.mxu0
        %840 = vmatpush.msra.mxu0 %v814
        %841 = vmatpush.msra.mxu0 %v813
        %842 = vmatpush.msra.mxu0 %v812
        %843 = vmatpush.msra.mxu0 %v811
        %844 = vmatpush.msra.mxu0 %v810
        %845 = vmatpush.msra.mxu0 %v809
        %846 = vmatpush.msra.mxu0 %v808
        %847 = vmatpush.msra.mxu0 %v807
        %848 = vmatpush.msra.mxu0 %v806
        %849 = vmatpush.msra.mxu0 %v805
        %850 = vmatpush.msra.mxu0 %v804
        %851 = vmatpush.msra.mxu0 %v803
        %852 = vmatpush.msra.mxu0 %v802
        %853 = vmatpush.msra.mxu0 %v801
        %854 = vmatpush.msra.mxu0 %v800
        %855 = vmatpush.msra.mxu0 %v799
        %856 = vmatmul.f32.gmra.mxu0 %v817
        %v857 = vpop.f32.mrf.mxu0
        %v858 = vadd.f32 %v838, %v857
        %859 = vdwg.mxu0
        %s860 = scalar_lea.vmem %s1, 32
        %v861 = vld [vmem:[%s860] sm:$0xff]
        %v863 = vsel %vm514, %v861, 0
        %v866 = vsel %vm518, %v858, 0
        %868 = vmatpush.msra.mxu0 0.0
        %869 = vmatpush.msra.mxu0 0.0
        %870 = vmatpush.msra.mxu0 0.0
        %871 = vmatpush.msra.mxu0 0.0
        %872 = vmatpush.msra.mxu0 0.0
        %873 = vmatpush.msra.mxu0 0.0
        %874 = vmatpush.msra.mxu0 0.0
        %875 = vmatpush.msra.mxu0 0.0
        %876 = vmatpush.msra.mxu0 0.0
        %877 = vmatpush.msra.mxu0 0.0
        %878 = vmatpush.msra.mxu0 0.0
        %879 = vmatpush.msra.mxu0 0.0
        %880 = vmatpush.msra.mxu0 0.0
        %881 = vmatpush.msra.mxu0 0.0
        %882 = vmatpush.msra.mxu0 0.0
        %883 = vmatpush.msra.mxu0 %v866
        %884 = vmatmul.f32.gmra.mxu0 %v863
        %v885 = vpop.f32.mrf.mxu0
        %v886 = vadd.f32 0.0, %v885
        %887 = vdwg.mxu0
        %v888 = vadd.f32 %v781, %v886
        %s889 = scalar_lea.vmem [#allocation2], 1280
        %v890 = vld [vmem:[%s889] sm:$0xff]
        %v891 = vld [vmem:[%s889 + $0x8] sm:$0xff]
        %v892 = vld [vmem:[%s889 + $0x10] sm:$0xff]
        %v893 = vld [vmem:[%s889 + $0x18] sm:$0xff]
        %v894 = vld [vmem:[%s889 + $0x20] sm:$0xff]
        %v895 = vld [vmem:[%s889 + $0x28] sm:$0xff]
        %v896 = vld [vmem:[%s889 + $0x30] sm:$0xff]
        %v897 = vld [vmem:[%s889 + $0x38] sm:$0xff]
        %v898 = vld [vmem:[%s889 + $0x40] sm:$0xff]
        %v899 = vld [vmem:[%s889 + $0x48] sm:$0xff]
        %v900 = vld [vmem:[%s889 + $0x50] sm:$0xff]
        %v901 = vld [vmem:[%s889 + $0x58] sm:$0xff]
        %v902 = vld [vmem:[%s889 + $0x60] sm:$0xff]
        %v903 = vld [vmem:[%s889 + $0x68] sm:$0xff]
        %v904 = vld [vmem:[%s889 + $0x70] sm:$0xff]
        %v905 = vld [vmem:[%s889 + $0x78] sm:$0xff]
        %v906 = vld [vmem:[%s889 + $0x80] sm:$0xff]
        %v907 = vld [vmem:[%s889 + $0x88] sm:$0xff]
        %v908 = vld [vmem:[%s889 + $0x90] sm:$0xff]
        %v909 = vld [vmem:[%s889 + $0x98] sm:$0xff]
        %v910 = vld [vmem:[%s889 + $0xa0] sm:$0xff]
        %v911 = vld [vmem:[%s889 + $0xa8] sm:$0xff]
        %v912 = vld [vmem:[%s889 + $0xb0] sm:$0xff]
        %v913 = vld [vmem:[%s889 + $0xb8] sm:$0xff]
        %v914 = vld [vmem:[%s889 + $0xc0] sm:$0xff]
        %v915 = vld [vmem:[%s889 + $0xc8] sm:$0xff]
        %v916 = vld [vmem:[%s889 + $0xd0] sm:$0xff]
        %v917 = vld [vmem:[%s889 + $0xd8] sm:$0xff]
        %v918 = vld [vmem:[%s889 + $0xe0] sm:$0xff]
        %v919 = vld [vmem:[%s889 + $0xe8] sm:$0xff]
        %v920 = vld [vmem:[%s889 + $0xf0] sm:$0xff]
        %v921 = vld [vmem:[%s889 + $0xf8] sm:$0xff]
        %922 = vst [vmem:[#allocation1] ss:$2 sm:$0xff] %v354
        %v923 = vld.sshfl [vmem:[#allocation1] sm:$0xff pattern:$0x75316420]
        %v924 = vld.sshfl [vmem:[#allocation1 + $0x8] sm:$0xff pattern:$0x75316420]
        %927 = vmatpush.msra.mxu0 %v905
        %928 = vmatpush.msra.mxu0 %v904
        %929 = vmatpush.msra.mxu0 %v903
        %930 = vmatpush.msra.mxu0 %v902
        %931 = vmatpush.msra.mxu0 %v901
        %932 = vmatpush.msra.mxu0 %v900
        %933 = vmatpush.msra.mxu0 %v899
        %934 = vmatpush.msra.mxu0 %v898
        %935 = vmatpush.msra.mxu0 %v897
        %936 = vmatpush.msra.mxu0 %v896
        %937 = vmatpush.msra.mxu0 %v895
        %938 = vmatpush.msra.mxu0 %v894
        %939 = vmatpush.msra.mxu0 %v893
        %940 = vmatpush.msra.mxu0 %v892
        %941 = vmatpush.msra.mxu0 %v891
        %942 = vmatpush.msra.mxu0 %v890
        %943 = vmatmul.f32.gmra.mxu0 %v923
        %v944 = vpop.f32.mrf.mxu0
        %v945 = vadd.f32 0.0, %v944
        %946 = vdwg.mxu0
        %947 = vmatpush.msra.mxu0 %v921
        %948 = vmatpush.msra.mxu0 %v920
        %949 = vmatpush.msra.mxu0 %v919
        %950 = vmatpush.msra.mxu0 %v918
        %951 = vmatpush.msra.mxu0 %v917
        %952 = vmatpush.msra.mxu0 %v916
        %953 = vmatpush.msra.mxu0 %v915
        %954 = vmatpush.msra.mxu0 %v914
        %955 = vmatpush.msra.mxu0 %v913
        %956 = vmatpush.msra.mxu0 %v912
        %957 = vmatpush.msra.mxu0 %v911
        %958 = vmatpush.msra.mxu0 %v910
        %959 = vmatpush.msra.mxu0 %v909
        %960 = vmatpush.msra.mxu0 %v908
        %961 = vmatpush.msra.mxu0 %v907
        %962 = vmatpush.msra.mxu0 %v906
        %963 = vmatmul.f32.gmra.mxu0 %v924
        %v964 = vpop.f32.mrf.mxu0
        %v965 = vadd.f32 %v945, %v964
        %966 = vdwg.mxu0
        %s967 = scalar_lea.vmem %s1, 40
        %v968 = vld [vmem:[%s967] sm:$0xff]
        %v970 = vsel %vm514, %v968, 0
        %v973 = vsel %vm518, %v965, 0
        %975 = vmatpush.msra.mxu0 0.0
        %976 = vmatpush.msra.mxu0 0.0
        %977 = vmatpush.msra.mxu0 0.0
        %978 = vmatpush.msra.mxu0 0.0
        %979 = vmatpush.msra.mxu0 0.0
        %980 = vmatpush.msra.mxu0 0.0
        %981 = vmatpush.msra.mxu0 0.0
        %982 = vmatpush.msra.mxu0 0.0
        %983 = vmatpush.msra.mxu0 0.0
        %984 = vmatpush.msra.mxu0 0.0
        %985 = vmatpush.msra.mxu0 0.0
        %986 = vmatpush.msra.mxu0 0.0
        %987 = vmatpush.msra.mxu0 0.0
        %988 = vmatpush.msra.mxu0 0.0
        %989 = vmatpush.msra.mxu0 0.0
        %990 = vmatpush.msra.mxu0 %v973
        %991 = vmatmul.f32.gmra.mxu0 %v970
        %v992 = vpop.f32.mrf.mxu0
        %v993 = vadd.f32 0.0, %v992
        %994 = vdwg.mxu0
        %v995 = vadd.f32 %v888, %v993
        %s996 = scalar_lea.vmem [#allocation2], 1536
        %v997 = vld [vmem:[%s996] sm:$0xff]
        %v998 = vld [vmem:[%s996 + $0x8] sm:$0xff]
        %v999 = vld [vmem:[%s996 + $0x10] sm:$0xff]
        %v1000 = vld [vmem:[%s996 + $0x18] sm:$0xff]
        %v1001 = vld [vmem:[%s996 + $0x20] sm:$0xff]
        %v1002 = vld [vmem:[%s996 + $0x28] sm:$0xff]
        %v1003 = vld [vmem:[%s996 + $0x30] sm:$0xff]
        %v1004 = vld [vmem:[%s996 + $0x38] sm:$0xff]
        %v1005 = vld [vmem:[%s996 + $0x40] sm:$0xff]
        %v1006 = vld [vmem:[%s996 + $0x48] sm:$0xff]
        %v1007 = vld [vmem:[%s996 + $0x50] sm:$0xff]
        %v1008 = vld [vmem:[%s996 + $0x58] sm:$0xff]
        %v1009 = vld [vmem:[%s996 + $0x60] sm:$0xff]
        %v1010 = vld [vmem:[%s996 + $0x68] sm:$0xff]
        %v1011 = vld [vmem:[%s996 + $0x70] sm:$0xff]
        %v1012 = vld [vmem:[%s996 + $0x78] sm:$0xff]
        %v1013 = vld [vmem:[%s996 + $0x80] sm:$0xff]
        %v1014 = vld [vmem:[%s996 + $0x88] sm:$0xff]
        %v1015 = vld [vmem:[%s996 + $0x90] sm:$0xff]
        %v1016 = vld [vmem:[%s996 + $0x98] sm:$0xff]
        %v1017 = vld [vmem:[%s996 + $0xa0] sm:$0xff]
        %v1018 = vld [vmem:[%s996 + $0xa8] sm:$0xff]
        %v1019 = vld [vmem:[%s996 + $0xb0] sm:$0xff]
        %v1020 = vld [vmem:[%s996 + $0xb8] sm:$0xff]
        %v1021 = vld [vmem:[%s996 + $0xc0] sm:$0xff]
        %v1022 = vld [vmem:[%s996 + $0xc8] sm:$0xff]
        %v1023 = vld [vmem:[%s996 + $0xd0] sm:$0xff]
        %v1024 = vld [vmem:[%s996 + $0xd8] sm:$0xff]
        %v1025 = vld [vmem:[%s996 + $0xe0] sm:$0xff]
        %v1026 = vld [vmem:[%s996 + $0xe8] sm:$0xff]
        %v1027 = vld [vmem:[%s996 + $0xf0] sm:$0xff]
        %v1028 = vld [vmem:[%s996 + $0xf8] sm:$0xff]
        %1029 = vst [vmem:[#allocation1] ss:$2 sm:$0xff] %v354
        %v1030 = vld.sshfl [vmem:[#allocation1] sm:$0xff pattern:$0x75316420]
        %v1031 = vld.sshfl [vmem:[#allocation1 + $0x8] sm:$0xff pattern:$0x75316420]
        %1034 = vmatpush.msra.mxu0 %v1012
        %1035 = vmatpush.msra.mxu0 %v1011
        %1036 = vmatpush.msra.mxu0 %v1010
        %1037 = vmatpush.msra.mxu0 %v1009
        %1038 = vmatpush.msra.mxu0 %v1008
        %1039 = vmatpush.msra.mxu0 %v1007
        %1040 = vmatpush.msra.mxu0 %v1006
        %1041 = vmatpush.msra.mxu0 %v1005
        %1042 = vmatpush.msra.mxu0 %v1004
        %1043 = vmatpush.msra.mxu0 %v1003
        %1044 = vmatpush.msra.mxu0 %v1002
        %1045 = vmatpush.msra.mxu0 %v1001
        %1046 = vmatpush.msra.mxu0 %v1000
        %1047 = vmatpush.msra.mxu0 %v999
        %1048 = vmatpush.msra.mxu0 %v998
        %1049 = vmatpush.msra.mxu0 %v997
        %1050 = vmatmul.f32.gmra.mxu0 %v1030
        %v1051 = vpop.f32.mrf.mxu0
        %v1052 = vadd.f32 0.0, %v1051
        %1053 = vdwg.mxu0
        %1054 = vmatpush.msra.mxu0 %v1028
        %1055 = vmatpush.msra.mxu0 %v1027
        %1056 = vmatpush.msra.mxu0 %v1026
        %1057 = vmatpush.msra.mxu0 %v1025
        %1058 = vmatpush.msra.mxu0 %v1024
        %1059 = vmatpush.msra.mxu0 %v1023
        %1060 = vmatpush.msra.mxu0 %v1022
        %1061 = vmatpush.msra.mxu0 %v1021
        %1062 = vmatpush.msra.mxu0 %v1020
        %1063 = vmatpush.msra.mxu0 %v1019
        %1064 = vmatpush.msra.mxu0 %v1018
        %1065 = vmatpush.msra.mxu0 %v1017
        %1066 = vmatpush.msra.mxu0 %v1016
        %1067 = vmatpush.msra.mxu0 %v1015
        %1068 = vmatpush.msra.mxu0 %v1014
        %1069 = vmatpush.msra.mxu0 %v1013
        %1070 = vmatmul.f32.gmra.mxu0 %v1031
        %v1071 = vpop.f32.mrf.mxu0
        %v1072 = vadd.f32 %v1052, %v1071
        %1073 = vdwg.mxu0
        %s1074 = scalar_lea.vmem %s1, 48
        %v1075 = vld [vmem:[%s1074] sm:$0xff]
        %v1077 = vsel %vm514, %v1075, 0
        %v1080 = vsel %vm518, %v1072, 0
        %1082 = vmatpush.msra.mxu0 0.0
        %1083 = vmatpush.msra.mxu0 0.0
        %1084 = vmatpush.msra.mxu0 0.0
        %1085 = vmatpush.msra.mxu0 0.0
        %1086 = vmatpush.msra.mxu0 0.0
        %1087 = vmatpush.msra.mxu0 0.0
        %1088 = vmatpush.msra.mxu0 0.0
        %1089 = vmatpush.msra.mxu0 0.0
        %1090 = vmatpush.msra.mxu0 0.0
        %1091 = vmatpush.msra.mxu0 0.0
        %1092 = vmatpush.msra.mxu0 0.0
        %1093 = vmatpush.msra.mxu0 0.0
        %1094 = vmatpush.msra.mxu0 0.0
        %1095 = vmatpush.msra.mxu0 0.0
        %1096 = vmatpush.msra.mxu0 0.0
        %1097 = vmatpush.msra.mxu0 %v1080
        %1098 = vmatmul.f32.gmra.mxu0 %v1077
        %v1099 = vpop.f32.mrf.mxu0
        %v1100 = vadd.f32 0.0, %v1099
        %1101 = vdwg.mxu0
        %v1102 = vadd.f32 %v995, %v1100
        %s1103 = scalar_lea.vmem [#allocation2], 1792
        %v1104 = vld [vmem:[%s1103] sm:$0xff]
        %v1105 = vld [vmem:[%s1103 + $0x8] sm:$0xff]
        %v1106 = vld [vmem:[%s1103 + $0x10] sm:$0xff]
        %v1107 = vld [vmem:[%s1103 + $0x18] sm:$0xff]
        %v1108 = vld [vmem:[%s1103 + $0x20] sm:$0xff]
        %v1109 = vld [vmem:[%s1103 + $0x28] sm:$0xff]
        %v1110 = vld [vmem:[%s1103 + $0x30] sm:$0xff]
        %v1111 = vld [vmem:[%s1103 + $0x38] sm:$0xff]
        %v1112 = vld [vmem:[%s1103 + $0x40] sm:$0xff]
        %v1113 = vld [vmem:[%s1103 + $0x48] sm:$0xff]
        %v1114 = vld [vmem:[%s1103 + $0x50] sm:$0xff]
        %v1115 = vld [vmem:[%s1103 + $0x58] sm:$0xff]
        %v1116 = vld [vmem:[%s1103 + $0x60] sm:$0xff]
        %v1117 = vld [vmem:[%s1103 + $0x68] sm:$0xff]
        %v1118 = vld [vmem:[%s1103 + $0x70] sm:$0xff]
        %v1119 = vld [vmem:[%s1103 + $0x78] sm:$0xff]
        %v1120 = vld [vmem:[%s1103 + $0x80] sm:$0xff]
        %v1121 = vld [vmem:[%s1103 + $0x88] sm:$0xff]
        %v1122 = vld [vmem:[%s1103 + $0x90] sm:$0xff]
        %v1123 = vld [vmem:[%s1103 + $0x98] sm:$0xff]
        %v1124 = vld [vmem:[%s1103 + $0xa0] sm:$0xff]
        %v1125 = vld [vmem:[%s1103 + $0xa8] sm:$0xff]
        %v1126 = vld [vmem:[%s1103 + $0xb0] sm:$0xff]
        %v1127 = vld [vmem:[%s1103 + $0xb8] sm:$0xff]
        %v1128 = vld [vmem:[%s1103 + $0xc0] sm:$0xff]
        %v1129 = vld [vmem:[%s1103 + $0xc8] sm:$0xff]
        %v1130 = vld [vmem:[%s1103 + $0xd0] sm:$0xff]
        %v1131 = vld [vmem:[%s1103 + $0xd8] sm:$0xff]
        %v1132 = vld [vmem:[%s1103 + $0xe0] sm:$0xff]
        %v1133 = vld [vmem:[%s1103 + $0xe8] sm:$0xff]
        %v1134 = vld [vmem:[%s1103 + $0xf0] sm:$0xff]
        %v1135 = vld [vmem:[%s1103 + $0xf8] sm:$0xff]
        %1136 = vst [vmem:[#allocation1] ss:$2 sm:$0xff] %v354
        %v1137 = vld.sshfl [vmem:[#allocation1] sm:$0xff pattern:$0x75316420]
        %v1138 = vld.sshfl [vmem:[#allocation1 + $0x8] sm:$0xff pattern:$0x75316420]
        %1141 = vmatpush.msra.mxu0 %v1119
        %1142 = vmatpush.msra.mxu0 %v1118
        %1143 = vmatpush.msra.mxu0 %v1117
        %1144 = vmatpush.msra.mxu0 %v1116
        %1145 = vmatpush.msra.mxu0 %v1115
        %1146 = vmatpush.msra.mxu0 %v1114
        %1147 = vmatpush.msra.mxu0 %v1113
        %1148 = vmatpush.msra.mxu0 %v1112
        %1149 = vmatpush.msra.mxu0 %v1111
        %1150 = vmatpush.msra.mxu0 %v1110
        %1151 = vmatpush.msra.mxu0 %v1109
        %1152 = vmatpush.msra.mxu0 %v1108
        %1153 = vmatpush.msra.mxu0 %v1107
        %1154 = vmatpush.msra.mxu0 %v1106
        %1155 = vmatpush.msra.mxu0 %v1105
        %1156 = vmatpush.msra.mxu0 %v1104
        %1157 = vmatmul.f32.gmra.mxu0 %v1137
        %v1158 = vpop.f32.mrf.mxu0
        %v1159 = vadd.f32 0.0, %v1158
        %1160 = vdwg.mxu0
        %1161 = vmatpush.msra.mxu0 %v1135
        %1162 = vmatpush.msra.mxu0 %v1134
        %1163 = vmatpush.msra.mxu0 %v1133
        %1164 = vmatpush.msra.mxu0 %v1132
        %1165 = vmatpush.msra.mxu0 %v1131
        %1166 = vmatpush.msra.mxu0 %v1130
        %1167 = vmatpush.msra.mxu0 %v1129
        %1168 = vmatpush.msra.mxu0 %v1128
        %1169 = vmatpush.msra.mxu0 %v1127
        %1170 = vmatpush.msra.mxu0 %v1126
        %1171 = vmatpush.msra.mxu0 %v1125
        %1172 = vmatpush.msra.mxu0 %v1124
        %1173 = vmatpush.msra.mxu0 %v1123
        %1174 = vmatpush.msra.mxu0 %v1122
        %1175 = vmatpush.msra.mxu0 %v1121
        %1176 = vmatpush.msra.mxu0 %v1120
        %1177 = vmatmul.f32.gmra.mxu0 %v1138
        %v1178 = vpop.f32.mrf.mxu0
        %v1179 = vadd.f32 %v1159, %v1178
        %1180 = vdwg.mxu0
        %s1181 = scalar_lea.vmem %s1, 56
        %v1182 = vld [vmem:[%s1181] sm:$0xff]
        %v1184 = vsel %vm514, %v1182, 0
        %v1187 = vsel %vm518, %v1179, 0
        %1189 = vmatpush.msra.mxu0 0.0
        %1190 = vmatpush.msra.mxu0 0.0
        %1191 = vmatpush.msra.mxu0 0.0
        %1192 = vmatpush.msra.mxu0 0.0
        %1193 = vmatpush.msra.mxu0 0.0
        %1194 = vmatpush.msra.mxu0 0.0
        %1195 = vmatpush.msra.mxu0 0.0
        %1196 = vmatpush.msra.mxu0 0.0
        %1197 = vmatpush.msra.mxu0 0.0
        %1198 = vmatpush.msra.mxu0 0.0
        %1199 = vmatpush.msra.mxu0 0.0
        %1200 = vmatpush.msra.mxu0 0.0
        %1201 = vmatpush.msra.mxu0 0.0
        %1202 = vmatpush.msra.mxu0 0.0
        %1203 = vmatpush.msra.mxu0 0.0
        %1204 = vmatpush.msra.mxu0 %v1187
        %1205 = vmatmul.f32.gmra.mxu0 %v1184
        %v1206 = vpop.f32.mrf.mxu0
        %v1207 = vadd.f32 0.0, %v1206
        %1208 = vdwg.mxu0
        %v1209 = vadd.f32 %v1102, %v1207
        %s1210 = scalar_lea.vmem [#allocation2], 2048
        %v1211 = vld [vmem:[%s1210] sm:$0xff]
        %v1212 = vld [vmem:[%s1210 + $0x8] sm:$0xff]
        %v1213 = vld [vmem:[%s1210 + $0x10] sm:$0xff]
        %v1214 = vld [vmem:[%s1210 + $0x18] sm:$0xff]
        %v1215 = vld [vmem:[%s1210 + $0x20] sm:$0xff]
        %v1216 = vld [vmem:[%s1210 + $0x28] sm:$0xff]
        %v1217 = vld [vmem:[%s1210 + $0x30] sm:$0xff]
        %v1218 = vld [vmem:[%s1210 + $0x38] sm:$0xff]
        %v1219 = vld [vmem:[%s1210 + $0x40] sm:$0xff]
        %v1220 = vld [vmem:[%s1210 + $0x48] sm:$0xff]
        %v1221 = vld [vmem:[%s1210 + $0x50] sm:$0xff]
        %v1222 = vld [vmem:[%s1210 + $0x58] sm:$0xff]
        %v1223 = vld [vmem:[%s1210 + $0x60] sm:$0xff]
        %v1224 = vld [vmem:[%s1210 + $0x68] sm:$0xff]
        %v1225 = vld [vmem:[%s1210 + $0x70] sm:$0xff]
        %v1226 = vld [vmem:[%s1210 + $0x78] sm:$0xff]
        %v1227 = vld [vmem:[%s1210 + $0x80] sm:$0xff]
        %v1228 = vld [vmem:[%s1210 + $0x88] sm:$0xff]
        %v1229 = vld [vmem:[%s1210 + $0x90] sm:$0xff]
        %v1230 = vld [vmem:[%s1210 + $0x98] sm:$0xff]
        %v1231 = vld [vmem:[%s1210 + $0xa0] sm:$0xff]
        %v1232 = vld [vmem:[%s1210 + $0xa8] sm:$0xff]
        %v1233 = vld [vmem:[%s1210 + $0xb0] sm:$0xff]
        %v1234 = vld [vmem:[%s1210 + $0xb8] sm:$0xff]
        %v1235 = vld [vmem:[%s1210 + $0xc0] sm:$0xff]
        %v1236 = vld [vmem:[%s1210 + $0xc8] sm:$0xff]
        %v1237 = vld [vmem:[%s1210 + $0xd0] sm:$0xff]
        %v1238 = vld [vmem:[%s1210 + $0xd8] sm:$0xff]
        %v1239 = vld [vmem:[%s1210 + $0xe0] sm:$0xff]
        %v1240 = vld [vmem:[%s1210 + $0xe8] sm:$0xff]
        %v1241 = vld [vmem:[%s1210 + $0xf0] sm:$0xff]
        %v1242 = vld [vmem:[%s1210 + $0xf8] sm:$0xff]
        %1243 = vst [vmem:[#allocation1] ss:$2 sm:$0xff] %v354
        %v1244 = vld.sshfl [vmem:[#allocation1] sm:$0xff pattern:$0x75316420]
        %v1245 = vld.sshfl [vmem:[#allocation1 + $0x8] sm:$0xff pattern:$0x75316420]
        %1248 = vmatpush.msra.mxu0 %v1226
        %1249 = vmatpush.msra.mxu0 %v1225
        %1250 = vmatpush.msra.mxu0 %v1224
        %1251 = vmatpush.msra.mxu0 %v1223
        %1252 = vmatpush.msra.mxu0 %v1222
        %1253 = vmatpush.msra.mxu0 %v1221
        %1254 = vmatpush.msra.mxu0 %v1220
        %1255 = vmatpush.msra.mxu0 %v1219
        %1256 = vmatpush.msra.mxu0 %v1218
        %1257 = vmatpush.msra.mxu0 %v1217
        %1258 = vmatpush.msra.mxu0 %v1216
        %1259 = vmatpush.msra.mxu0 %v1215
        %1260 = vmatpush.msra.mxu0 %v1214
        %1261 = vmatpush.msra.mxu0 %v1213
        %1262 = vmatpush.msra.mxu0 %v1212
        %1263 = vmatpush.msra.mxu0 %v1211
        %1264 = vmatmul.f32.gmra.mxu0 %v1244
        %v1265 = vpop.f32.mrf.mxu0
        %v1266 = vadd.f32 0.0, %v1265
        %1267 = vdwg.mxu0
        %1268 = vmatpush.msra.mxu0 %v1242
        %1269 = vmatpush.msra.mxu0 %v1241
        %1270 = vmatpush.msra.mxu0 %v1240
        %1271 = vmatpush.msra.mxu0 %v1239
        %1272 = vmatpush.msra.mxu0 %v1238
        %1273 = vmatpush.msra.mxu0 %v1237
        %1274 = vmatpush.msra.mxu0 %v1236
        %1275 = vmatpush.msra.mxu0 %v1235
        %1276 = vmatpush.msra.mxu0 %v1234
        %1277 = vmatpush.msra.mxu0 %v1233
        %1278 = vmatpush.msra.mxu0 %v1232
        %1279 = vmatpush.msra.mxu0 %v1231
        %1280 = vmatpush.msra.mxu0 %v1230
        %1281 = vmatpush.msra.mxu0 %v1229
        %1282 = vmatpush.msra.mxu0 %v1228
        %1283 = vmatpush.msra.mxu0 %v1227
        %1284 = vmatmul.f32.gmra.mxu0 %v1245
        %v1285 = vpop.f32.mrf.mxu0
        %v1286 = vadd.f32 %v1266, %v1285
        %1287 = vdwg.mxu0
        %s1288 = scalar_lea.vmem %s1, 64
        %v1289 = vld [vmem:[%s1288] sm:$0xff]
        %v1291 = vsel %vm514, %v1289, 0
        %v1294 = vsel %vm518, %v1286, 0
        %1296 = vmatpush.msra.mxu0 0.0
        %1297 = vmatpush.msra.mxu0 0.0
        %1298 = vmatpush.msra.mxu0 0.0
        %1299 = vmatpush.msra.mxu0 0.0
        %1300 = vmatpush.msra.mxu0 0.0
        %1301 = vmatpush.msra.mxu0 0.0
        %1302 = vmatpush.msra.mxu0 0.0
        %1303 = vmatpush.msra.mxu0 0.0
        %1304 = vmatpush.msra.mxu0 0.0
        %1305 = vmatpush.msra.mxu0 0.0
        %1306 = vmatpush.msra.mxu0 0.0
        %1307 = vmatpush.msra.mxu0 0.0
        %1308 = vmatpush.msra.mxu0 0.0
        %1309 = vmatpush.msra.mxu0 0.0
        %1310 = vmatpush.msra.mxu0 0.0
        %1311 = vmatpush.msra.mxu0 %v1294
        %1312 = vmatmul.f32.gmra.mxu0 %v1291
        %v1313 = vpop.f32.mrf.mxu0
        %v1314 = vadd.f32 0.0, %v1313
        %1315 = vdwg.mxu0
        %v1316 = vadd.f32 %v1209, %v1314
        %v1317 = vld [vmem:[%s2] sm:$0xff]
        %1319 = vset.pattern.permute.xlu0 0
        %1320 = vperm.xlu0 %1319, %v1317
        %v1321 = vpop.permute.xlu0 %1320
        %v1323 = vadd.f32 %v1316, %v1321
        %v1324 = vmax.f32 %v1323, 0.0
        %v1325 = vld [vmem:[#allocation4] sm:$0xff]
        %v1326 = vld [vmem:[#allocation4 + $0x8] sm:$0xff]
        %v1327 = vld [vmem:[#allocation4 + $0x10] sm:$0xff]
        %v1328 = vld [vmem:[#allocation4 + $0x18] sm:$0xff]
        %v1329 = vld [vmem:[#allocation4 + $0x20] sm:$0xff]
        %v1330 = vld [vmem:[#allocation4 + $0x28] sm:$0xff]
        %v1331 = vld [vmem:[#allocation4 + $0x30] sm:$0x1]
        %vm1332 = vcmask 400384
        %v1334 = vsel %vm1332, %v1324, 0
        %vm1336 = vcmask 1040384
        %v1338 = vsel %vm1336, %v1331, 0
        %1340 = vmatpush.msra.mxu0 0.0
        %1341 = vmatpush.msra.mxu0 0.0
        %1342 = vmatpush.msra.mxu0 0.0
        %1343 = vmatpush.msra.mxu0 0.0
        %1344 = vmatpush.msra.mxu0 0.0
        %1345 = vmatpush.msra.mxu0 0.0
        %1346 = vmatpush.msra.mxu0 0.0
        %1347 = vmatpush.msra.mxu0 0.0
        %1348 = vmatpush.msra.mxu0 0.0
        %1349 = vmatpush.msra.mxu0 %v1338
        %1350 = vmatpush.msra.mxu0 %v1330
        %1351 = vmatpush.msra.mxu0 %v1329
        %1352 = vmatpush.msra.mxu0 %v1328
        %1353 = vmatpush.msra.mxu0 %v1327
        %1354 = vmatpush.msra.mxu0 %v1326
        %1355 = vmatpush.msra.mxu0 %v1325
        %1356 = vmatmul.f32.gmra.mxu0 %v1334
        %v1357 = vpop.f32.mrf.mxu0
        %v1358 = vadd.f32 0.0, %v1357
        %1359 = vdwg.mxu0
        %v1360 = vld [vmem:[%s4] sm:$0xff]
        %v1361 = vld [vmem:[%s4 + $0x8] sm:$0xff]
        %s1362 = scalar_lea.vmem [#allocation4], 56
        %v1363 = vld [vmem:[%s1362] sm:$0xff]
        %v1364 = vld [vmem:[%s1362 + $0x8] sm:$0xff]
        %v1365 = vld [vmem:[%s1362 + $0x10] sm:$0xff]
        %v1366 = vld [vmem:[%s1362 + $0x18] sm:$0xff]
        %v1367 = vld [vmem:[%s1362 + $0x20] sm:$0xff]
        %v1368 = vld [vmem:[%s1362 + $0x28] sm:$0xff]
        %v1369 = vld [vmem:[%s1362 + $0x30] sm:$0x1]
        %v1371 = vsel %vm1336, %v1369, 0
        %1373 = vmatpush.msra.mxu0 0.0
        %1374 = vmatpush.msra.mxu0 0.0
        %1375 = vmatpush.msra.mxu0 0.0
        %1376 = vmatpush.msra.mxu0 0.0
        %1377 = vmatpush.msra.mxu0 0.0
        %1378 = vmatpush.msra.mxu0 0.0
        %1379 = vmatpush.msra.mxu0 0.0
        %1380 = vmatpush.msra.mxu0 0.0
        %1381 = vmatpush.msra.mxu0 0.0
        %1382 = vmatpush.msra.mxu0 %v1371
        %1383 = vmatpush.msra.mxu0 %v1368
        %1384 = vmatpush.msra.mxu0 %v1367
        %1385 = vmatpush.msra.mxu0 %v1366
        %1386 = vmatpush.msra.mxu0 %v1365
        %1387 = vmatpush.msra.mxu0 %v1364
        %1388 = vmatpush.msra.mxu0 %v1363
        %1389 = vmatmul.f32.gmra.mxu0 %v1334
        %v1390 = vpop.f32.mrf.mxu0
        %v1391 = vadd.f32 0.0, %v1390
        %1392 = vdwg.mxu0
        %s1393 = scalar_lea.vmem %s4, 16
        %v1394 = vld [vmem:[%s1393] sm:$0xff]
        %v1395 = vld [vmem:[%s1393 + $0x8] sm:$0xff]
        %vm1396 = vcmask 64512
        %v1398 = vsel %vm1396, %v1394, 0
        %v1401 = vsel %vm1396, %v1395, 0
        %1403 = vmatpush.msra.mxu0 0.0
        %1404 = vmatpush.msra.mxu0 0.0
        %1405 = vmatpush.msra.mxu0 0.0
        %1406 = vmatpush.msra.mxu0 0.0
        %1407 = vmatpush.msra.mxu0 0.0
        %1408 = vmatpush.msra.mxu0 0.0
        %1409 = vmatpush.msra.mxu0 0.0
        %1410 = vmatpush.msra.mxu0 0.0
        %1411 = vmatpush.msra.mxu0 0.0
        %1412 = vmatpush.msra.mxu0 0.0
        %1413 = vmatpush.msra.mxu0 0.0
        %1414 = vmatpush.msra.mxu0 0.0
        %1415 = vmatpush.msra.mxu0 0.0
        %1416 = vmatpush.msra.mxu0 0.0
        %1417 = vmatpush.msra.mxu0 0.0
        %1418 = vmatpush.msra.mxu0 %v1391
        %1419 = vmatmul.f32.gmra.mxu0 %v1398
        %v1420 = vpop.f32.mrf.mxu0
        %v1421 = vadd.f32 0.0, %v1420
        %1422 = vmatmul.f32.gmra.mxu0 %v1401
        %v1423 = vpop.f32.mrf.mxu0
        %v1424 = vadd.f32 0.0, %v1423
        %1425 = vdwg.mxu0
        %v1427 = vsel %vm1396, %v1360, 0
        %v1430 = vsel %vm1396, %v1361, 0
        %1432 = vmatpush.msra.mxu0 0.0
        %1433 = vmatpush.msra.mxu0 0.0
        %1434 = vmatpush.msra.mxu0 0.0
        %1435 = vmatpush.msra.mxu0 0.0
        %1436 = vmatpush.msra.mxu0 0.0
        %1437 = vmatpush.msra.mxu0 0.0
        %1438 = vmatpush.msra.mxu0 0.0
        %1439 = vmatpush.msra.mxu0 0.0
        %1440 = vmatpush.msra.mxu0 0.0
        %1441 = vmatpush.msra.mxu0 0.0
        %1442 = vmatpush.msra.mxu0 0.0
        %1443 = vmatpush.msra.mxu0 0.0
        %1444 = vmatpush.msra.mxu0 0.0
        %1445 = vmatpush.msra.mxu0 0.0
        %1446 = vmatpush.msra.mxu0 0.0
        %1447 = vmatpush.msra.mxu0 %v1358
        %1448 = vmatmul.f32.gmra.mxu0 %v1427
        %v1449 = vpop.f32.mrf.mxu0
        %v1450 = vadd.f32 %v1421, %v1449
        %1451 = vmatmul.f32.gmra.mxu0 %v1430
        %v1452 = vpop.f32.mrf.mxu0
        %v1453 = vadd.f32 %v1424, %v1452
        %1454 = vdwg.mxu0
        %s1455 = scalar_lea.vmem [#allocation4], 112
        %v1456 = vld [vmem:[%s1455] sm:$0xff]
        %v1457 = vld [vmem:[%s1455 + $0x8] sm:$0xff]
        %v1458 = vld [vmem:[%s1455 + $0x10] sm:$0xff]
        %v1459 = vld [vmem:[%s1455 + $0x18] sm:$0xff]
        %v1460 = vld [vmem:[%s1455 + $0x20] sm:$0xff]
        %v1461 = vld [vmem:[%s1455 + $0x28] sm:$0xff]
        %v1462 = vld [vmem:[%s1455 + $0x30] sm:$0x1]
        %v1464 = vsel %vm1336, %v1462, 0
        %1466 = vmatpush.msra.mxu0 0.0
        %1467 = vmatpush.msra.mxu0 0.0
        %1468 = vmatpush.msra.mxu0 0.0
        %1469 = vmatpush.msra.mxu0 0.0
        %1470 = vmatpush.msra.mxu0 0.0
        %1471 = vmatpush.msra.mxu0 0.0
        %1472 = vmatpush.msra.mxu0 0.0
        %1473 = vmatpush.msra.mxu0 0.0
        %1474 = vmatpush.msra.mxu0 0.0
        %1475 = vmatpush.msra.mxu0 %v1464
        %1476 = vmatpush.msra.mxu0 %v1461
        %1477 = vmatpush.msra.mxu0 %v1460
        %1478 = vmatpush.msra.mxu0 %v1459
        %1479 = vmatpush.msra.mxu0 %v1458
        %1480 = vmatpush.msra.mxu0 %v1457
        %1481 = vmatpush.msra.mxu0 %v1456
        %1482 = vmatmul.f32.gmra.mxu0 %v1334
        %v1483 = vpop.f32.mrf.mxu0
        %v1484 = vadd.f32 0.0, %v1483
        %1485 = vdwg.mxu0
        %s1486 = scalar_lea.vmem %s4, 32
        %v1487 = vld [vmem:[%s1486] sm:$0xff]
        %v1488 = vld [vmem:[%s1486 + $0x8] sm:$0xff]
        %v1490 = vsel %vm1396, %v1487, 0
        %v1493 = vsel %vm1396, %v1488, 0
        %1495 = vmatpush.msra.mxu0 0.0
        %1496 = vmatpush.msra.mxu0 0.0
        %1497 = vmatpush.msra.mxu0 0.0
        %1498 = vmatpush.msra.mxu0 0.0
        %1499 = vmatpush.msra.mxu0 0.0
        %1500 = vmatpush.msra.mxu0 0.0
        %1501 = vmatpush.msra.mxu0 0.0
        %1502 = vmatpush.msra.mxu0 0.0
        %1503 = vmatpush.msra.mxu0 0.0
        %1504 = vmatpush.msra.mxu0 0.0
        %1505 = vmatpush.msra.mxu0 0.0
        %1506 = vmatpush.msra.mxu0 0.0
        %1507 = vmatpush.msra.mxu0 0.0
        %1508 = vmatpush.msra.mxu0 0.0
        %1509 = vmatpush.msra.mxu0 0.0
        %1510 = vmatpush.msra.mxu0 %v1484
        %1511 = vmatmul.f32.gmra.mxu0 %v1490
        %v1512 = vpop.f32.mrf.mxu0
        %v1513 = vadd.f32 0.0, %v1512
        %1514 = vmatmul.f32.gmra.mxu0 %v1493
        %v1515 = vpop.f32.mrf.mxu0
        %v1516 = vadd.f32 0.0, %v1515
        %1517 = vdwg.mxu0
        %v1518 = vadd.f32 %v1450, %v1513
        %v1519 = vadd.f32 %v1453, %v1516
        %s1520 = scalar_lea.vmem [#allocation4], 168
        %v1521 = vld [vmem:[%s1520] sm:$0xff]
        %v1522 = vld [vmem:[%s1520 + $0x8] sm:$0xff]
        %v1523 = vld [vmem:[%s1520 + $0x10] sm:$0xff]
        %v1524 = vld [vmem:[%s1520 + $0x18] sm:$0xff]
        %v1525 = vld [vmem:[%s1520 + $0x20] sm:$0xff]
        %v1526 = vld [vmem:[%s1520 + $0x28] sm:$0xff]
        %v1527 = vld [vmem:[%s1520 + $0x30] sm:$0x1]
        %v1529 = vsel %vm1336, %v1527, 0
        %1531 = vmatpush.msra.mxu0 0.0
        %1532 = vmatpush.msra.mxu0 0.0
        %1533 = vmatpush.msra.mxu0 0.0
        %1534 = vmatpush.msra.mxu0 0.0
        %1535 = vmatpush.msra.mxu0 0.0
        %1536 = vmatpush.msra.mxu0 0.0
        %1537 = vmatpush.msra.mxu0 0.0
        %1538 = vmatpush.msra.mxu0 0.0
        %1539 = vmatpush.msra.mxu0 0.0
        %1540 = vmatpush.msra.mxu0 %v1529
        %1541 = vmatpush.msra.mxu0 %v1526
        %1542 = vmatpush.msra.mxu0 %v1525
        %1543 = vmatpush.msra.mxu0 %v1524
        %1544 = vmatpush.msra.mxu0 %v1523
        %1545 = vmatpush.msra.mxu0 %v1522
        %1546 = vmatpush.msra.mxu0 %v1521
        %1547 = vmatmul.f32.gmra.mxu0 %v1334
        %v1548 = vpop.f32.mrf.mxu0
        %v1549 = vadd.f32 0.0, %v1548
        %1550 = vdwg.mxu0
        %s1551 = scalar_lea.vmem %s4, 48
        %v1552 = vld [vmem:[%s1551] sm:$0xff]
        %v1553 = vld [vmem:[%s1551 + $0x8] sm:$0xff]
        %v1555 = vsel %vm1396, %v1552, 0
        %v1558 = vsel %vm1396, %v1553, 0
        %1560 = vmatpush.msra.mxu0 0.0
        %1561 = vmatpush.msra.mxu0 0.0
        %1562 = vmatpush.msra.mxu0 0.0
        %1563 = vmatpush.msra.mxu0 0.0
        %1564 = vmatpush.msra.mxu0 0.0
        %1565 = vmatpush.msra.mxu0 0.0
        %1566 = vmatpush.msra.mxu0 0.0
        %1567 = vmatpush.msra.mxu0 0.0
        %1568 = vmatpush.msra.mxu0 0.0
        %1569 = vmatpush.msra.mxu0 0.0
        %1570 = vmatpush.msra.mxu0 0.0
        %1571 = vmatpush.msra.mxu0 0.0
        %1572 = vmatpush.msra.mxu0 0.0
        %1573 = vmatpush.msra.mxu0 0.0
        %1574 = vmatpush.msra.mxu0 0.0
        %1575 = vmatpush.msra.mxu0 %v1549
        %1576 = vmatmul.f32.gmra.mxu0 %v1555
        %v1577 = vpop.f32.mrf.mxu0
        %v1578 = vadd.f32 0.0, %v1577
        %1579 = vmatmul.f32.gmra.mxu0 %v1558
        %v1580 = vpop.f32.mrf.mxu0
        %v1581 = vadd.f32 0.0, %v1580
        %1582 = vdwg.mxu0
        %v1583 = vadd.f32 %v1518, %v1578
        %v1584 = vadd.f32 %v1519, %v1581
        %s1585 = scalar_lea.vmem [#allocation4], 224
        %v1586 = vld [vmem:[%s1585] sm:$0xff]
        %v1587 = vld [vmem:[%s1585 + $0x8] sm:$0xff]
        %v1588 = vld [vmem:[%s1585 + $0x10] sm:$0xff]
        %v1589 = vld [vmem:[%s1585 + $0x18] sm:$0xff]
        %v1590 = vld [vmem:[%s1585 + $0x20] sm:$0xff]
        %v1591 = vld [vmem:[%s1585 + $0x28] sm:$0xff]
        %v1592 = vld [vmem:[%s1585 + $0x30] sm:$0x1]
        %v1594 = vsel %vm1336, %v1592, 0
        %1596 = vmatpush.msra.mxu0 0.0
        %1597 = vmatpush.msra.mxu0 0.0
        %1598 = vmatpush.msra.mxu0 0.0
        %1599 = vmatpush.msra.mxu0 0.0
        %1600 = vmatpush.msra.mxu0 0.0
        %1601 = vmatpush.msra.mxu0 0.0
        %1602 = vmatpush.msra.mxu0 0.0
        %1603 = vmatpush.msra.mxu0 0.0
        %1604 = vmatpush.msra.mxu0 0.0
        %1605 = vmatpush.msra.mxu0 %v1594
        %1606 = vmatpush.msra.mxu0 %v1591
        %1607 = vmatpush.msra.mxu0 %v1590
        %1608 = vmatpush.msra.mxu0 %v1589
        %1609 = vmatpush.msra.mxu0 %v1588
        %1610 = vmatpush.msra.mxu0 %v1587
        %1611 = vmatpush.msra.mxu0 %v1586
        %1612 = vmatmul.f32.gmra.mxu0 %v1334
        %v1613 = vpop.f32.mrf.mxu0
        %v1614 = vadd.f32 0.0, %v1613
        %1615 = vdwg.mxu0
        %s1616 = scalar_lea.vmem %s4, 64
        %v1617 = vld [vmem:[%s1616] sm:$0xff]
        %v1618 = vld [vmem:[%s1616 + $0x8] sm:$0xff]
        %v1620 = vsel %vm1396, %v1617, 0
        %v1623 = vsel %vm1396, %v1618, 0
        %1625 = vmatpush.msra.mxu0 0.0
        %1626 = vmatpush.msra.mxu0 0.0
        %1627 = vmatpush.msra.mxu0 0.0
        %1628 = vmatpush.msra.mxu0 0.0
        %1629 = vmatpush.msra.mxu0 0.0
        %1630 = vmatpush.msra.mxu0 0.0
        %1631 = vmatpush.msra.mxu0 0.0
        %1632 = vmatpush.msra.mxu0 0.0
        %1633 = vmatpush.msra.mxu0 0.0
        %1634 = vmatpush.msra.mxu0 0.0
        %1635 = vmatpush.msra.mxu0 0.0
        %1636 = vmatpush.msra.mxu0 0.0
        %1637 = vmatpush.msra.mxu0 0.0
        %1638 = vmatpush.msra.mxu0 0.0
        %1639 = vmatpush.msra.mxu0 0.0
        %1640 = vmatpush.msra.mxu0 %v1614
        %1641 = vmatmul.f32.gmra.mxu0 %v1620
        %v1642 = vpop.f32.mrf.mxu0
        %v1643 = vadd.f32 0.0, %v1642
        %1644 = vmatmul.f32.gmra.mxu0 %v1623
        %v1645 = vpop.f32.mrf.mxu0
        %v1646 = vadd.f32 0.0, %v1645
        %1647 = vdwg.mxu0
        %v1648 = vadd.f32 %v1583, %v1643
        %v1649 = vadd.f32 %v1584, %v1646
        %s1650 = scalar_lea.vmem [#allocation4], 280
        %v1651 = vld [vmem:[%s1650] sm:$0xff]
        %v1652 = vld [vmem:[%s1650 + $0x8] sm:$0xff]
        %v1653 = vld [vmem:[%s1650 + $0x10] sm:$0xff]
        %v1654 = vld [vmem:[%s1650 + $0x18] sm:$0xff]
        %v1655 = vld [vmem:[%s1650 + $0x20] sm:$0xff]
        %v1656 = vld [vmem:[%s1650 + $0x28] sm:$0xff]
        %v1657 = vld [vmem:[%s1650 + $0x30] sm:$0x1]
        %v1659 = vsel %vm1336, %v1657, 0
        %1661 = vmatpush.msra.mxu0 0.0
        %1662 = vmatpush.msra.mxu0 0.0
        %1663 = vmatpush.msra.mxu0 0.0
        %1664 = vmatpush.msra.mxu0 0.0
        %1665 = vmatpush.msra.mxu0 0.0
        %1666 = vmatpush.msra.mxu0 0.0
        %1667 = vmatpush.msra.mxu0 0.0
        %1668 = vmatpush.msra.mxu0 0.0
        %1669 = vmatpush.msra.mxu0 0.0
        %1670 = vmatpush.msra.mxu0 %v1659
        %1671 = vmatpush.msra.mxu0 %v1656
        %1672 = vmatpush.msra.mxu0 %v1655
        %1673 = vmatpush.msra.mxu0 %v1654
        %1674 = vmatpush.msra.mxu0 %v1653
        %1675 = vmatpush.msra.mxu0 %v1652
        %1676 = vmatpush.msra.mxu0 %v1651
        %1677 = vmatmul.f32.gmra.mxu0 %v1334
        %v1678 = vpop.f32.mrf.mxu0
        %v1679 = vadd.f32 0.0, %v1678
        %1680 = vdwg.mxu0
        %s1681 = scalar_lea.vmem %s4, 80
        %v1682 = vld [vmem:[%s1681] sm:$0xff]
        %v1683 = vld [vmem:[%s1681 + $0x8] sm:$0xff]
        %v1685 = vsel %vm1396, %v1682, 0
        %v1688 = vsel %vm1396, %v1683, 0
        %1690 = vmatpush.msra.mxu0 0.0
        %1691 = vmatpush.msra.mxu0 0.0
        %1692 = vmatpush.msra.mxu0 0.0
        %1693 = vmatpush.msra.mxu0 0.0
        %1694 = vmatpush.msra.mxu0 0.0
        %1695 = vmatpush.msra.mxu0 0.0
        %1696 = vmatpush.msra.mxu0 0.0
        %1697 = vmatpush.msra.mxu0 0.0
        %1698 = vmatpush.msra.mxu0 0.0
        %1699 = vmatpush.msra.mxu0 0.0
        %1700 = vmatpush.msra.mxu0 0.0
        %1701 = vmatpush.msra.mxu0 0.0
        %1702 = vmatpush.msra.mxu0 0.0
        %1703 = vmatpush.msra.mxu0 0.0
        %1704 = vmatpush.msra.mxu0 0.0
        %1705 = vmatpush.msra.mxu0 %v1679
        %1706 = vmatmul.f32.gmra.mxu0 %v1685
        %v1707 = vpop.f32.mrf.mxu0
        %v1708 = vadd.f32 0.0, %v1707
        %1709 = vmatmul.f32.gmra.mxu0 %v1688
        %v1710 = vpop.f32.mrf.mxu0
        %v1711 = vadd.f32 0.0, %v1710
        %1712 = vdwg.mxu0
        %v1713 = vadd.f32 %v1648, %v1708
        %v1714 = vadd.f32 %v1649, %v1711
        %s1715 = scalar_lea.vmem [#allocation4], 336
        %v1716 = vld [vmem:[%s1715] sm:$0xff]
        %v1717 = vld [vmem:[%s1715 + $0x8] sm:$0xff]
        %v1718 = vld [vmem:[%s1715 + $0x10] sm:$0xff]
        %v1719 = vld [vmem:[%s1715 + $0x18] sm:$0xff]
        %v1720 = vld [vmem:[%s1715 + $0x20] sm:$0xff]
        %v1721 = vld [vmem:[%s1715 + $0x28] sm:$0xff]
        %v1722 = vld [vmem:[%s1715 + $0x30] sm:$0x1]
        %v1724 = vsel %vm1336, %v1722, 0
        %1726 = vmatpush.msra.mxu0 0.0
        %1727 = vmatpush.msra.mxu0 0.0
        %1728 = vmatpush.msra.mxu0 0.0
        %1729 = vmatpush.msra.mxu0 0.0
        %1730 = vmatpush.msra.mxu0 0.0
        %1731 = vmatpush.msra.mxu0 0.0
        %1732 = vmatpush.msra.mxu0 0.0
        %1733 = vmatpush.msra.mxu0 0.0
        %1734 = vmatpush.msra.mxu0 0.0
        %1735 = vmatpush.msra.mxu0 %v1724
        %1736 = vmatpush.msra.mxu0 %v1721
        %1737 = vmatpush.msra.mxu0 %v1720
        %1738 = vmatpush.msra.mxu0 %v1719
        %1739 = vmatpush.msra.mxu0 %v1718
        %1740 = vmatpush.msra.mxu0 %v1717
        %1741 = vmatpush.msra.mxu0 %v1716
        %1742 = vmatmul.f32.gmra.mxu0 %v1334
        %v1743 = vpop.f32.mrf.mxu0
        %v1744 = vadd.f32 0.0, %v1743
        %1745 = vdwg.mxu0
        %s1746 = scalar_lea.vmem %s4, 96
        %v1747 = vld [vmem:[%s1746] sm:$0xff]
        %v1748 = vld [vmem:[%s1746 + $0x8] sm:$0xff]
        %v1750 = vsel %vm1396, %v1747, 0
        %v1753 = vsel %vm1396, %v1748, 0
        %1755 = vmatpush.msra.mxu0 0.0
        %1756 = vmatpush.msra.mxu0 0.0
        %1757 = vmatpush.msra.mxu0 0.0
        %1758 = vmatpush.msra.mxu0 0.0
        %1759 = vmatpush.msra.mxu0 0.0
        %1760 = vmatpush.msra.mxu0 0.0
        %1761 = vmatpush.msra.mxu0 0.0
        %1762 = vmatpush.msra.mxu0 0.0
        %1763 = vmatpush.msra.mxu0 0.0
        %1764 = vmatpush.msra.mxu0 0.0
        %1765 = vmatpush.msra.mxu0 0.0
        %1766 = vmatpush.msra.mxu0 0.0
        %1767 = vmatpush.msra.mxu0 0.0
        %1768 = vmatpush.msra.mxu0 0.0
        %1769 = vmatpush.msra.mxu0 0.0
        %1770 = vmatpush.msra.mxu0 %v1744
        %1771 = vmatmul.f32.gmra.mxu0 %v1750
        %v1772 = vpop.f32.mrf.mxu0
        %v1773 = vadd.f32 0.0, %v1772
        %1774 = vmatmul.f32.gmra.mxu0 %v1753
        %v1775 = vpop.f32.mrf.mxu0
        %v1776 = vadd.f32 0.0, %v1775
        %1777 = vdwg.mxu0
        %v1778 = vadd.f32 %v1713, %v1773
        %v1779 = vadd.f32 %v1714, %v1776
        %s1780 = scalar_lea.vmem [#allocation4], 392
        %v1781 = vld [vmem:[%s1780] sm:$0xff]
        %v1782 = vld [vmem:[%s1780 + $0x8] sm:$0xff]
        %v1783 = vld [vmem:[%s1780 + $0x10] sm:$0xff]
        %v1784 = vld [vmem:[%s1780 + $0x18] sm:$0xff]
        %v1785 = vld [vmem:[%s1780 + $0x20] sm:$0xff]
        %v1786 = vld [vmem:[%s1780 + $0x28] sm:$0xff]
        %v1787 = vld [vmem:[%s1780 + $0x30] sm:$0x1]
        %v1789 = vsel %vm1336, %v1787, 0
        %1791 = vmatpush.msra.mxu0 0.0
        %1792 = vmatpush.msra.mxu0 0.0
        %1793 = vmatpush.msra.mxu0 0.0
        %1794 = vmatpush.msra.mxu0 0.0
        %1795 = vmatpush.msra.mxu0 0.0
        %1796 = vmatpush.msra.mxu0 0.0
        %1797 = vmatpush.msra.mxu0 0.0
        %1798 = vmatpush.msra.mxu0 0.0
        %1799 = vmatpush.msra.mxu0 0.0
        %1800 = vmatpush.msra.mxu0 %v1789
        %1801 = vmatpush.msra.mxu0 %v1786
        %1802 = vmatpush.msra.mxu0 %v1785
        %1803 = vmatpush.msra.mxu0 %v1784
        %1804 = vmatpush.msra.mxu0 %v1783
        %1805 = vmatpush.msra.mxu0 %v1782
        %1806 = vmatpush.msra.mxu0 %v1781
        %1807 = vmatmul.f32.gmra.mxu0 %v1334
        %v1808 = vpop.f32.mrf.mxu0
        %v1809 = vadd.f32 0.0, %v1808
        %1810 = vdwg.mxu0
        %s1811 = scalar_lea.vmem %s4, 112
        %v1812 = vld [vmem:[%s1811] sm:$0xff]
        %v1813 = vld [vmem:[%s1811 + $0x8] sm:$0xff]
        %v1815 = vsel %vm1396, %v1812, 0
        %v1818 = vsel %vm1396, %v1813, 0
        %1820 = vmatpush.msra.mxu0 0.0
        %1821 = vmatpush.msra.mxu0 0.0
        %1822 = vmatpush.msra.mxu0 0.0
        %1823 = vmatpush.msra.mxu0 0.0
        %1824 = vmatpush.msra.mxu0 0.0
        %1825 = vmatpush.msra.mxu0 0.0
        %1826 = vmatpush.msra.mxu0 0.0
        %1827 = vmatpush.msra.mxu0 0.0
        %1828 = vmatpush.msra.mxu0 0.0
        %1829 = vmatpush.msra.mxu0 0.0
        %1830 = vmatpush.msra.mxu0 0.0
        %1831 = vmatpush.msra.mxu0 0.0
        %1832 = vmatpush.msra.mxu0 0.0
        %1833 = vmatpush.msra.mxu0 0.0
        %1834 = vmatpush.msra.mxu0 0.0
        %1835 = vmatpush.msra.mxu0 %v1809
        %1836 = vmatmul.f32.gmra.mxu0 %v1815
        %v1837 = vpop.f32.mrf.mxu0
        %v1838 = vadd.f32 0.0, %v1837
        %1839 = vmatmul.f32.gmra.mxu0 %v1818
        %v1840 = vpop.f32.mrf.mxu0
        %v1841 = vadd.f32 0.0, %v1840
        %1842 = vdwg.mxu0
        %v1843 = vadd.f32 %v1778, %v1838
        %v1844 = vadd.f32 %v1779, %v1841
        %s1845 = scalar_lea.vmem [#allocation4], 448
        %v1846 = vld [vmem:[%s1845] sm:$0xff]
        %v1847 = vld [vmem:[%s1845 + $0x8] sm:$0xff]
        %v1848 = vld [vmem:[%s1845 + $0x10] sm:$0xff]
        %v1849 = vld [vmem:[%s1845 + $0x18] sm:$0xff]
        %v1850 = vld [vmem:[%s1845 + $0x20] sm:$0xff]
        %v1851 = vld [vmem:[%s1845 + $0x28] sm:$0xff]
        %v1852 = vld [vmem:[%s1845 + $0x30] sm:$0x1]
        %v1854 = vsel %vm1336, %v1852, 0
        %1856 = vmatpush.msra.mxu0 0.0
        %1857 = vmatpush.msra.mxu0 0.0
        %1858 = vmatpush.msra.mxu0 0.0
        %1859 = vmatpush.msra.mxu0 0.0
        %1860 = vmatpush.msra.mxu0 0.0
        %1861 = vmatpush.msra.mxu0 0.0
        %1862 = vmatpush.msra.mxu0 0.0
        %1863 = vmatpush.msra.mxu0 0.0
        %1864 = vmatpush.msra.mxu0 0.0
        %1865 = vmatpush.msra.mxu0 %v1854
        %1866 = vmatpush.msra.mxu0 %v1851
        %1867 = vmatpush.msra.mxu0 %v1850
        %1868 = vmatpush.msra.mxu0 %v1849
        %1869 = vmatpush.msra.mxu0 %v1848
        %1870 = vmatpush.msra.mxu0 %v1847
        %1871 = vmatpush.msra.mxu0 %v1846
        %1872 = vmatmul.f32.gmra.mxu0 %v1334
        %v1873 = vpop.f32.mrf.mxu0
        %v1874 = vadd.f32 0.0, %v1873
        %1875 = vdwg.mxu0
        %s1876 = scalar_lea.vmem %s4, 128
        %v1877 = vld [vmem:[%s1876] sm:$0xff]
        %v1878 = vld [vmem:[%s1876 + $0x8] sm:$0xff]
        %v1880 = vsel %vm1396, %v1877, 0
        %v1883 = vsel %vm1396, %v1878, 0
        %1885 = vmatpush.msra.mxu0 0.0
        %1886 = vmatpush.msra.mxu0 0.0
        %1887 = vmatpush.msra.mxu0 0.0
        %1888 = vmatpush.msra.mxu0 0.0
        %1889 = vmatpush.msra.mxu0 0.0
        %1890 = vmatpush.msra.mxu0 0.0
        %1891 = vmatpush.msra.mxu0 0.0
        %1892 = vmatpush.msra.mxu0 0.0
        %1893 = vmatpush.msra.mxu0 0.0
        %1894 = vmatpush.msra.mxu0 0.0
        %1895 = vmatpush.msra.mxu0 0.0
        %1896 = vmatpush.msra.mxu0 0.0
        %1897 = vmatpush.msra.mxu0 0.0
        %1898 = vmatpush.msra.mxu0 0.0
        %1899 = vmatpush.msra.mxu0 0.0
        %1900 = vmatpush.msra.mxu0 %v1874
        %1901 = vmatmul.f32.gmra.mxu0 %v1880
        %v1902 = vpop.f32.mrf.mxu0
        %v1903 = vadd.f32 0.0, %v1902
        %1904 = vmatmul.f32.gmra.mxu0 %v1883
        %v1905 = vpop.f32.mrf.mxu0
        %v1906 = vadd.f32 0.0, %v1905
        %1907 = vdwg.mxu0
        %v1908 = vadd.f32 %v1843, %v1903
        %v1909 = vadd.f32 %v1844, %v1906
        %v1910 = vld [vmem:[%s5] sm:$0xff]
        %v1911 = vld [vmem:[%s5 + $0x8] sm:$0xff]
        %1913 = vset.pattern.permute.xlu0 0
        %1914 = vperm.xlu0 %1913, %v1910
        %v1915 = vpop.permute.xlu0 %1914
        %1918 = vset.pattern.permute.xlu0 0
        %1919 = vperm.xlu0 %1918, %v1911
        %v1920 = vpop.permute.xlu0 %1919
        %v1922 = vadd.f32 %v1908, %v1915
        %v1923 = vadd.f32 %v1909, %v1920
        %vm1924 = vcmask 72704
        %v1925 = vsel %vm1924, %v1922, -inf
        %1926 = vmax.xlane.f32.xlu0 %v1925
        %v1927 = vpop.xlane.xlu0 %1926
        %v1928 = vsel %vm1924, %v1923, -inf
        %1929 = vmax.xlane.f32.xlu0 %v1928
        %v1930 = vpop.xlane.xlu0 %1929
        %v1931 = vsub.f32 %v1922, %v1927
        %v1932 = vsub.f32 %v1923, %v1930
        %v1933 = vmul.f32 %v1931, 1.442695
        %v1934 = vpow.pop %v1933
        %v1935 = vmul.f32 %v1932, 1.442695
        %v1936 = vpow.pop %v1935
        %v1937 = vsel %vm1924, %v1934, 0.0
        %1938 = vadd.xlane.f32.xlu0 %v1937
        %v1939 = vpop.xlane.xlu0 %1938
        %v1940 = vsel %vm1924, %v1936, 0.0
        %1941 = vadd.xlane.f32.xlu0 %v1940
        %v1942 = vpop.xlane.xlu0 %1941
        %v1943 = vrcp.pop %v1939
        %v1944 = vrcp.pop %v1942
        %v1945 = vmul.f32 %v1934, %v1943
        %v1946 = vmul.f32 %v1936, %v1944
        %v1947 = vld [vmem:[#allocation6] sm:$0x1]
        %v1948 = vperm.slane %v1947, 0
        %v1949 = vmul.f32 %v1948, %v1945
        %v1950 = vmul.f32 %v1948, %v1946
        %v1951 = vsel %vm1924, %v1949, 0.0
        %1952 = vadd.xlane.f32.xlu0 %v1951
        %v1953 = vpop.xlane.xlu0 %1952
        %v1954 = vsel %vm1924, %v1950, 0.0
        %1955 = vadd.xlane.f32.xlu0 %v1954
        %v1956 = vpop.xlane.xlu0 %1955
        %v1957 = vld [vmem:[#allocation6 + $0x1] sm:$0x1]
        %v1958 = vperm.slane %v1957, 0
        %v1959 = vmul.f32 %v1958, %v1945
        %v1960 = vmul.f32 %v1958, %v1946
        %v1961 = vsel %vm1924, %v1959, 0.0
        %1962 = vadd.xlane.f32.xlu0 %v1961
        %v1963 = vpop.xlane.xlu0 %1962
        %v1964 = vsel %vm1924, %v1960, 0.0
        %1965 = vadd.xlane.f32.xlu0 %v1964
        %v1966 = vpop.xlane.xlu0 %1965
        %vm1967 = vcmask 7168
        %v1968 = vsel %vm1967, %v1953, %v1963
        %v1969 = vsel %vm1967, %v1956, %v1966
        %vm1970 = vcmask 15360
        %1971 = vst.msk [vmem:[%s353] sm:$0xff] %vm1970, %v1968
        %1972 = vst.msk [vmem:[%s353 + $0x8] sm:$0xff] %vm1970, %v1969
        %p1973 = scmp.lt.s32.totalorder %s21, 1
        %s1974 = scalar_select %p1973, %s21, 1
        %s1975 = smul.addr %s1974, 2
        %s1976 = smul.addr %s1975, 8
        %s1977 = scalar_lea.vmem %s8, %s1976
        // Predicated region
        $region65: #{forward.1} parent=51 // pred_check
          %p1978 = pneg %p212
        $region66: #{forward.1} parent=51 // pred_check_branch
          %1980 = sbr.rel (%p1978) target = $region68
        $region67: #{forward.1} parent=51 // pred_region
          _
        $region68: #{forward.1} parent=51 // pred_fallthru
          _
      $region52: #{forward.1} parent=5 // pred_fallthru
        _
      %p1981 = scmp.le.s32.totalorder 2, %s16
      // Predicated region
      $region69: #{forward.1} parent=5 // pred_check
        %p1982 = pneg %p1981
      $region70: #{forward.1} parent=5 // pred_check_branch
        %1984 = sbr.rel (%p1982) target = $region72
      $region71: #{forward.1} parent=5 // pred_region
        %s1985 = ssub.s32 %s16, 2
        // Predicated region
        $region73: #{forward.1} parent=71 // pred_check
          %p1986 = pneg %p218
        $region74: #{forward.1} parent=71 // pred_check_branch
          %1988 = sbr.rel (%p1986) target = $region76
        $region75: #{forward.1} parent=71 // pred_region
          %p1989 = scmp.lt.s32.totalorder %s22, 1
          %s1990 = scalar_select %p1989, %s22, 1
          %s1991 = smul.addr %s1990, 2
          %s1992 = smul.addr %s1991, 8
          %s1993 = scalar_lea.vmem %s8, %s1992
        $region76: #{forward.1} parent=71 // pred_fallthru
          _
      $region72: #{forward.1} parent=5 // pred_fallthru
        _
    $region6: #{forward.1} parent=1 // loop_footer
      %s20 = sadd.s32 1, %s16
    $region7: #{forward.1} parent=1 // loop_footer_branch
      %15 = sbr.rel target = $region3
    $region8: #{forward.1} parent=1 // loop_exit
      _
    %1994 = vsyncpa [#allocation3], 1
    %s1995 = scalar_lea.sflag [#allocation3], 1
    %1996 = vsyncpa %s1995, 1
    %1997 = vsyncpa [#allocation5], 1

</llo_original>
